<compile_context>
chip_gen: v5e
topology: v5e:2x2
jax: 0.10.0
libtpu: 0.0.40
codegen_flags: <defaults>
</compile_context>

<pallas_src>
import functools
import math

import numpy as np
import jax
import jax.numpy as jnp
from jax import lax
from jax.experimental import pallas as pl
from jax.experimental.pallas import tpu as pltpu


_BN_EPS = 1e-5                   # torch BatchNorm1d default eps


def _round_up(x, m):
    return ((x + m - 1) // m) * m


def _vmem_budgets():
    # v5e / v6e: 128 MiB physical VMEM -> large budgets.
    # v7x: 64 MiB per TensorCore -> conservative budgets (also the fallback).
    try:
        cap = int(pltpu.get_tpu_info().vmem_capacity_bytes)
    except Exception:
        cap = 0
    if cap >= 100 * 1024 * 1024:
        return 96 << 20, 24 << 20
    return 40 << 20, 12 << 20


_VMEM_LIMIT, _NN_BUDGET = _vmem_budgets()


def _params(semantics):
    return pltpu.CompilerParams(dimension_semantics=semantics,
                                vmem_limit_bytes=_VMEM_LIMIT)


def _feature_row_tile(m):
    # Big tiles amortize the ~0.35us/step overhead, but keep >= 2 grid steps so
    # both v7x TensorCores get work on the "parallel" row axis.
    half = -(-m // 2)
    return int(max(8, min(2048, _round_up(half, 8))))


def _nn_row_block(n):
    # Row tile for the (bn, N) graph kernels: ~8*N bytes/row double-buffered.
    per_row = 16 * max(n, 1)
    b = max(8, min(1024, _NN_BUDGET // per_row))
    b = (b // 8) * 8
    b = min(b, _round_up(n, 8))
    half = _round_up(-(-n // 2), 8)
    b = min(b, max(half, 8))          # keep >= 2 parallel steps when possible
    return int(max(b, 8))


# ---------------------------------------------------------------------------
# Fused per-point feature pipeline
# ---------------------------------------------------------------------------
def _encoder_fused_kernel(x_ref, w1_ref, b1_ref, w2_ref, b2_ref, wc_ref, bc_ref,
                          f1_ref, z_ref, fm_ref, st_ref, *, n_rows, block_m, w0):
    """x -> relu(xW1+b1)=f1 -> relu(f1W2+b2)=f2 (kept in vregs)
       -> y = f2 @ [W_base0 | W_map] + [b_base0 | 0]  (single MXU pass over f2)
       outputs: f1 (bf16), z0 = y[:, :w0] (pre-BN, bf16), fm = y[:, w0:] (bf16)
       plus exact per-tile f32 BN statistics of z0 (edge-tile rows masked)."""
    i = pl.program_id(0)
    x = x_ref[...].astype(jnp.bfloat16)
    f1 = jnp.dot(x, w1_ref[...], preferred_element_type=jnp.float32) + b1_ref[...]
    f1 = jnp.maximum(f1, 0.0)
    f2 = jnp.dot(f1.astype(jnp.bfloat16), w2_ref[...],
                 preferred_element_type=jnp.float32) + b2_ref[...]
    f2 = jnp.maximum(f2, 0.0)
    y = jnp.dot(f2.astype(jnp.bfloat16), wc_ref[...],
                preferred_element_type=jnp.float32) + bc_ref[...]
    z = y[:, :w0]
    fm = y[:, w0:]
    f1_ref[...] = f1.astype(f1_ref.dtype)
    z_ref[...] = z.astype(z_ref.dtype)
    fm_ref[...] = fm.astype(fm_ref.dtype)

    row = lax.broadcasted_iota(jnp.int32, z.shape, 0) + i * block_m
    zm = jnp.where(row < n_rows, z, 0.0)
    st_ref[0, 0:1, :] = jnp.sum(zm, axis=0, keepdims=True)
    st_ref[0, 1:2, :] = jnp.sum(zm * zm, axis=0, keepdims=True)


def _bn_conv_kernel(z_ref, sc_ref, sh_ref, w_ref, b_ref, zo_ref, st_ref,
                    *, n_rows, block_m):
    """h = relu(BN(z_prev)) via precomputed affine; z = h @ W + b; partial stats."""
    i = pl.program_id(0)
    h = jnp.maximum(z_ref[...].astype(jnp.float32) * sc_ref[...] + sh_ref[...], 0.0)
    z = jnp.dot(h.astype(jnp.bfloat16), w_ref[...],
                preferred_element_type=jnp.float32) + b_ref[...]
    zo_ref[...] = z.astype(zo_ref.dtype)
    row = lax.broadcasted_iota(jnp.int32, z.shape, 0) + i * block_m
    zm = jnp.where(row < n_rows, z, 0.0)
    st_ref[0, 0:1, :] = jnp.sum(zm, axis=0, keepdims=True)
    st_ref[0, 1:2, :] = jnp.sum(zm * zm, axis=0, keepdims=True)


def _bn_concat_kernel(f1_ref, fm_ref, z_ref, sc_ref, sh_ref, o_ref):
    """Final BN (no ReLU, last BaseLearner layer) + concat into feature slab."""
    c1 = f1_ref.shape[1]
    od = fm_ref.shape[1]
    o_ref[:, :c1] = f1_ref[...].astype(jnp.float32)
    o_ref[:, c1:c1 + od] = fm_ref[...].astype(jnp.float32)
    o_ref[:, c1 + od:] = z_ref[...].astype(jnp.float32) * sc_ref[...] + sh_ref[...]


def fused_encoder(x_rows, w1, b1, w2, b2, wcat, bcat, *, block_m, w0):
    M, C = x_rows.shape
    c1 = w1.shape[1]
    od = wcat.shape[1] - w0
    g = pl.cdiv(M, block_m)
    rep = lambda i: (0, 0)
    return pl.pallas_call(
        functools.partial(_encoder_fused_kernel, n_rows=M, block_m=block_m, w0=w0),
        grid=(g,),
        out_shape=(jax.ShapeDtypeStruct((M, c1), jnp.bfloat16),
                   jax.ShapeDtypeStruct((M, w0), jnp.bfloat16),
                   jax.ShapeDtypeStruct((M, od), jnp.bfloat16),
                   jax.ShapeDtypeStruct((g, 2, w0), jnp.float32)),
        in_specs=[pl.BlockSpec((block_m, C), lambda i: (i, 0)),
                  pl.BlockSpec(w1.shape, rep), pl.BlockSpec(b1.shape, rep),
                  pl.BlockSpec(w2.shape, rep), pl.BlockSpec(b2.shape, rep),
                  pl.BlockSpec(wcat.shape, rep), pl.BlockSpec(bcat.shape, rep)],
        out_specs=(pl.BlockSpec((block_m, c1), lambda i: (i, 0)),
                   pl.BlockSpec((block_m, w0), lambda i: (i, 0)),
                   pl.BlockSpec((block_m, od), lambda i: (i, 0)),
                   pl.BlockSpec((1, 2, w0), lambda i: (i, 0, 0))),
        compiler_params=_params(("parallel",)),
    )(x_rows, w1, b1, w2, b2, wcat, bcat)


def bn_conv(z, scale, shift, w, b, *, block_m):
    M, K = z.shape
    n = w.shape[1]
    g = pl.cdiv(M, block_m)
    rep = lambda i: (0, 0)
    return pl.pallas_call(
        functools.partial(_bn_conv_kernel, n_rows=M, block_m=block_m),
        grid=(g,),
        out_shape=(jax.ShapeDtypeStruct((M, n), jnp.bfloat16),
                   jax.ShapeDtypeStruct((g, 2, n), jnp.float32)),
        in_specs=[pl.BlockSpec((block_m, K), lambda i: (i, 0)),
                  pl.BlockSpec(scale.shape, rep), pl.BlockSpec(shift.shape, rep),
                  pl.BlockSpec(w.shape, rep), pl.BlockSpec(b.shape, rep)],
        out_specs=(pl.BlockSpec((block_m, n), lambda i: (i, 0)),
                   pl.BlockSpec((1, 2, n), lambda i: (i, 0, 0))),
        compiler_params=_params(("parallel",)),
    )(z, scale, shift, w, b)


def bn_concat(f1, fm, z, scale, shift, *, block_m):
    M, c1 = f1.shape
    od = fm.shape[1]
    wl = z.shape[1]
    rep = lambda i: (0, 0)
    return pl.pallas_call(
        _bn_concat_kernel,
        grid=(pl.cdiv(M, block_m),),
        out_shape=jax.ShapeDtypeStruct((M, c1 + od + wl), jnp.float32),
        in_specs=[pl.BlockSpec((block_m, c1), lambda i: (i, 0)),
                  pl.BlockSpec((block_m, od), lambda i: (i, 0)),
                  pl.BlockSpec((block_m, wl), lambda i: (i, 0)),
                  pl.BlockSpec(scale.shape, rep), pl.BlockSpec(shift.shape, rep)],
        out_specs=pl.BlockSpec((block_m, c1 + od + wl), lambda i: (i, 0)),
        compiler_params=_params(("parallel",)),
    )(f1, fm, z, scale, shift)


def _bn_affine(stats, n_rows, gamma, beta, eps=_BN_EPS):
    """Training-mode BN (biased variance) folded into a (1, W) affine."""
    s = jnp.sum(stats, axis=0)                            # (2, W) exact batch sums
    mean = s[0] / n_rows
    var = jnp.maximum(s[1] / n_rows - mean * mean, 0.0)
    inv = lax.rsqrt(var + eps)
    scale = (gamma * inv).reshape(1, -1).astype(jnp.float32)
    shift = (beta - mean * gamma * inv).reshape(1, -1).astype(jnp.float32)
    return scale, shift


# ---------------------------------------------------------------------------
# kNN graph: fused Gaussian similarity + per-row top-(k+1) threshold (pass 1)
# and fused masked / symmetrized affinity + degree (pass 2).
# ---------------------------------------------------------------------------
def _knn_threshold_kernel(xr_ref, xt_ref, nr_ref, nc_ref, vr_ref, vc_ref, thr_ref,
                          *, neg_half_inv_sig2, kplus1):
    g = jnp.dot(xr_ref[...], xt_ref[...], preferred_element_type=jnp.float32)
    d2 = jnp.maximum(nr_ref[...] + nc_ref[...] - 2.0 * g, 0.0)
    sim = jnp.exp(neg_half_inv_sig2 * d2) * vr_ref[...] * vc_ref[...]
    # (k+1)-th largest per row via repeated max extraction (k+1 is small, all
    # sims are in [0, 1] so -1 is a safe sentinel).  Exact ties may keep a few
    # extra neighbors, same caveat as the faiss/scatter reference.
    cur = sim
    thr = jnp.max(cur, axis=1, keepdims=True)
    for _ in range(kplus1 - 1):
        cur = jnp.where(cur >= thr, -1.0, cur)
        thr = jnp.max(cur, axis=1, keepdims=True)
    thr_ref[...] = thr


def _knn_graph_kernel(xr_ref, xt_ref, nr_ref, nc_ref, vr_ref, vc_ref, tr_ref, tc_ref,
                      a_ref, d_ref, *, neg_half_inv_sig2, block_n):
    """A_sym = sim * ((sim >= thr_row) + (sim >= thr_col)), zero diagonal, plus
    row sums (degree).  Replaces the XLA scatter / A+A.T / eye-mask / colsum."""
    i = pl.program_id(0)
    g = jnp.dot(xr_ref[...], xt_ref[...], preferred_element_type=jnp.float32)
    d2 = jnp.maximum(nr_ref[...] + nc_ref[...] - 2.0 * g, 0.0)
    sim = jnp.exp(neg_half_inv_sig2 * d2) * vr_ref[...] * vc_ref[...]
    keep = ((sim >= tr_ref[...]).astype(jnp.float32) +
            (sim >= tc_ref[...]).astype(jnp.float32))
    row = lax.broadcasted_iota(jnp.int32, sim.shape, 0) + i * block_n
    col = lax.broadcasted_iota(jnp.int32, sim.shape, 1)
    a = jnp.where(row == col, 0.0, sim * keep)
    a_ref[...] = a
    d_ref[...] = jnp.sum(a, axis=1, keepdims=True)


def pallas_knn_threshold(xb, xt, norms, valid, *, sigma, kplus1, block_n):
    N, D = xb.shape
    return pl.pallas_call(
        functools.partial(_knn_threshold_kernel,
                          neg_half_inv_sig2=-0.5 / float(sigma) ** 2,
                          kplus1=int(kplus1)),
        grid=(pl.cdiv(N, block_n),),
        out_shape=jax.ShapeDtypeStruct((N, 1), jnp.float32),
        in_specs=[pl.BlockSpec((block_n, D), lambda i: (i, 0)),
                  pl.BlockSpec((D, N), lambda i: (0, 0)),
                  pl.BlockSpec((block_n, 1), lambda i: (i, 0)),
                  pl.BlockSpec((1, N), lambda i: (0, 0)),
                  pl.BlockSpec((block_n, 1), lambda i: (i, 0)),
                  pl.BlockSpec((1, N), lambda i: (0, 0))],
        out_specs=pl.BlockSpec((block_n, 1), lambda i: (i, 0)),
        compiler_params=_params(("parallel",)),
    )(xb, xt, norms, norms.reshape(1, N), valid, valid.reshape(1, N))


def pallas_knn_graph(xb, xt, norms, valid, thr, *, sigma, block_n):
    N, D = xb.shape
    return pl.pallas_call(
        functools.partial(_knn_graph_kernel,
                          neg_half_inv_sig2=-0.5 / float(sigma) ** 2,
                          block_n=block_n),
        grid=(pl.cdiv(N, block_n),),
        out_shape=(jax.ShapeDtypeStruct((N, N), jnp.float32),
                   jax.ShapeDtypeStruct((N, 1), jnp.float32)),
        in_specs=[pl.BlockSpec((block_n, D), lambda i: (i, 0)),
                  pl.BlockSpec((D, N), lambda i: (0, 0)),
                  pl.BlockSpec((block_n, 1), lambda i: (i, 0)),
                  pl.BlockSpec((1, N), lambda i: (0, 0)),
                  pl.BlockSpec((block_n, 1), lambda i: (i, 0)),
                  pl.BlockSpec((1, N), lambda i: (0, 0)),
                  pl.BlockSpec((block_n, 1), lambda i: (i, 0)),
                  pl.BlockSpec((1, N), lambda i: (0, 0))],
        out_specs=(pl.BlockSpec((block_n, N), lambda i: (i, 0)),
                   pl.BlockSpec((block_n, 1), lambda i: (i, 0))),
        compiler_params=_params(("parallel",)),
    )(xb, xt, norms, norms.reshape(1, N), valid, valid.reshape(1, N),
      thr, thr.reshape(1, N))


# ---------------------------------------------------------------------------
# Label propagation: CG solve of (I - alpha*S + eps*J) Z = Y, with the operator
# application fused into one row-tiled Pallas matvec (S is never materialized).
# ---------------------------------------------------------------------------
def _prop_matvec_kernel(a_ref, ps_ref, p_ref, dr_ref, cs_ref, o_ref, *, alpha):
    ap = jnp.dot(a_ref[...], ps_ref[...], preferred_element_type=jnp.float32)
    o_ref[...] = p_ref[...] - alpha * (dr_ref[...] * ap) + cs_ref[...]


@functools.partial(jax.jit, static_argnames=("alpha", "eps", "n_iters", "block_n"))
def _cg_label_propagate(A, Y, dinv, *, alpha, eps, n_iters, block_n):
    """Conjugate-gradient solve of the SPD system (I - alpha*S + eps*J) Z = Y,
    S = D^-1/2 A D^-1/2, J = all-ones.  Equivalent to the reference inverse
    (kappa <= (1+alpha)/(1-alpha), n_iters chosen for ~1e-8 residual)."""
    N, Cp = Y.shape
    matvec_call = pl.pallas_call(
        functools.partial(_prop_matvec_kernel, alpha=alpha),
        grid=(pl.cdiv(N, block_n),),
        out_shape=jax.ShapeDtypeStruct((N, Cp), jnp.float32),
        in_specs=[pl.BlockSpec((block_n, N), lambda i: (i, 0)),
                  pl.BlockSpec((N, Cp), lambda i: (0, 0)),
                  pl.BlockSpec((block_n, Cp), lambda i: (i, 0)),
                  pl.BlockSpec((block_n, 1), lambda i: (i, 0)),
                  pl.BlockSpec((1, Cp), lambda i: (0, 0))],
        out_specs=pl.BlockSpec((block_n, Cp), lambda i: (i, 0)),
        compiler_params=_params(("parallel",)),
    )

    def matvec(p):
        ps = p * dinv
        cs = eps * jnp.sum(p, axis=0, keepdims=True)
        return matvec_call(A, ps, p, dinv, cs)

    def safe_div(num, den):
        ok = den > 0.0
        return jnp.where(ok, num / jnp.where(ok, den, 1.0), 0.0)

    x = Y
    r = Y - matvec(Y)
    p = r
    rs = jnp.sum(r * r, axis=0, keepdims=True)

    def body(_, carry):
        x, r, p, rs = carry
        mp = matvec(p)
        a_cg = safe_div(rs, jnp.sum(p * mp, axis=0, keepdims=True))
        x = x + a_cg * p
        r = r - a_cg * mp
        rs_new = jnp.sum(r * r, axis=0, keepdims=True)
        beta = safe_div(rs_new, rs)
        p = r + beta * p
        return x, r, p, rs_new

    x, _, _, _ = lax.fori_loop(0, n_iters, body, (x, r, p, rs))
    return x


# ---------------------------------------------------------------------------
# Cross-entropy: tiled rows, integer labels, SMEM scalar accumulator
# ---------------------------------------------------------------------------
def _ce_kernel(z_ref, y_ref, o_ref, *, n_rows, block_m):
    i = pl.program_id(0)
    z = z_ref[...]
    lab = y_ref[...]                                            # (bm, 1) int32
    col = lax.broadcasted_iota(jnp.int32, z.shape, 1)
    m = jnp.max(z, axis=1, keepdims=True)
    lse = jnp.log(jnp.sum(jnp.exp(z - m), axis=1, keepdims=True)) + m
    picked = jnp.sum(jnp.where(col == lab, z, 0.0), axis=1, keepdims=True)
    ridx = lax.broadcasted_iota(jnp.int32, (z.shape[0], 1), 0) + i * block_m
    nll = jnp.where(ridx < n_rows, lse - picked, 0.0)

    @pl.when(i == 0)
    def _():
        o_ref[0, 0] = 0.0

    o_ref[0, 0] += jnp.sum(nll) * (1.0 / n_rows)


def pallas_cross_entropy(logits, labels):
    logits = logits.astype(jnp.float32)
    M, C = logits.shape
    labels = labels.reshape(M, 1).astype(jnp.int32)
    bm = min(512, _round_up(M, 8))
    out = pl.pallas_call(
        functools.partial(_ce_kernel, n_rows=M, block_m=bm),
        grid=(pl.cdiv(M, bm),),
        out_shape=jax.ShapeDtypeStruct((1, 1), jnp.float32),
        in_specs=[pl.BlockSpec((bm, C), lambda i: (i, 0)),
                  pl.BlockSpec((bm, 1), lambda i: (i, 0))],
        out_specs=pl.BlockSpec(memory_space=pltpu.MemorySpace.SMEM),
        compiler_params=_params(("arbitrary",)),
    )(logits, labels)
    return out[0, 0]


# ---------------------------------------------------------------------------
# Host-side glue (data-dependent shapes): FPS + prototype assembly
# ---------------------------------------------------------------------------
def _fps_unique(x, ratio):
    # torch_geometric.nn.fps(random_start=False): start at index 0, select
    # ceil(ratio * n) farthest points; .unique() afterwards (sorted).
    n = x.shape[0]
    m = max(1, int(math.ceil(ratio * n)))
    sel = [0]
    dmin = np.full(n, np.inf, dtype=np.float64)
    last = 0
    for _ in range(m - 1):
        dmin = np.minimum(dmin, np.sum((x - x[last]) ** 2, axis=1))
        last = int(np.argmax(dmin))
        sel.append(last)
    return np.unique(np.asarray(sel, dtype=np.int64))


def get_multiple_prototypes(feat, k, feat_dim):
    # TODO(synk): FPS + cluster-mean run on host numpy (sequential, data-dependent sizes).
    feat = np.asarray(feat, dtype=np.float32)
    n = feat.shape[0]
    assert n > 0
    ratio = k / n
    if ratio < 1:
        idx = _fps_unique(feat, ratio)
        seeds = feat[idx]
        diff = feat[:, None, :] - seeds[None, :, :] + 1e-6       # torch pairwise_distance eps
        dist = np.sqrt(np.sum(diff ** 2, axis=2))
        assign = np.argmin(dist, axis=1)
        protos = np.zeros((len(idx), feat_dim), dtype=np.float32)
        for i in range(len(idx)):
            protos[i] = feat[assign == i].mean(0)
        return protos
    return feat


def get_fg_prototypes(feats, masks, k, n_way, n_classes, feat_dim):
    protos, labels = [], []
    for i in range(n_way):
        feat = np.asarray(feats[i]).reshape(-1, feat_dim)
        mask = np.asarray(masks[i]).reshape(-1).astype(bool)
        cp = get_multiple_prototypes(feat[mask], k, feat_dim)
        protos.append(cp)
        lab = np.zeros((cp.shape[0], n_classes), dtype=np.float32)
        lab[:, i + 1] = 1.0
        labels.append(lab)
    return np.concatenate(protos, 0), np.concatenate(labels, 0)


def get_bg_prototypes(feats, masks, k, n_classes, feat_dim):
    feat = np.asarray(feats).reshape(-1, feat_dim)
    mask = np.asarray(masks).reshape(-1).astype(bool)
    feat = feat[mask]
    if feat.shape[0] == 0:
        return None, None
    protos = get_multiple_prototypes(feat, k, feat_dim)
    labels = np.zeros((protos.shape[0], n_classes), dtype=np.float32)
    labels[:, 0] = 1.0
    return protos, labels


# ---------------------------------------------------------------------------
# Model
# ---------------------------------------------------------------------------
class MPTIPallas:
    def __init__(self, args, key):
        self.n_way = args.n_way
        self.k_shot = args.k_shot
        self.in_channels = args.pc_in_dim
        self.n_points = args.pc_npts
        self.n_subprototypes = args.n_subprototypes
        self.k_connect = args.k_connect
        self.sigma = args.sigma
        self.n_classes = self.n_way + 1
        self.feat_dim = args.edgeconv_widths[0][-1] + args.output_dim + args.base_widths[-1]

        c_in = args.pc_in_dim
        c1 = args.edgeconv_widths[0][-1]       # feat_level1 channels
        c2 = args.dgcnn_mlp_widths[-1]         # feat_level2 channels
        ks = jax.random.split(key, 8)
        s = 0.1
        # TODO(synk): real DGCNN edge-conv encoder / SelfAttention not provided;
        # substituted by a deterministic point-wise MLP producing feat_level1/feat_level2.
        # Matmul weights are kept in bf16 (MXU operands); biases / BN affine stay f32.
        self.enc_w1 = (jax.random.normal(ks[0], (c_in, c1), jnp.float32) * s).astype(jnp.bfloat16)
        self.enc_b1 = jnp.zeros((1, c1), jnp.float32)
        self.enc_w2 = (jax.random.normal(ks[1], (c1, c2), jnp.float32) * s).astype(jnp.bfloat16)
        self.enc_b2 = jnp.zeros((1, c2), jnp.float32)
        # linear_mapper: Conv1d(c2, output_dim, 1, bias=False)
        self.map_w = (jax.random.normal(ks[2], (c2, args.output_dim), jnp.float32) * s).astype(jnp.bfloat16)
        # BaseLearner: [Conv1d(1x1) + BatchNorm1d] per width, ReLU between layers
        self.base_params = []
        in_dim = c2
        for i, w_out in enumerate(args.base_widths):
            w = (jax.random.normal(ks[3 + i], (in_dim, w_out), jnp.float32) * s).astype(jnp.bfloat16)
            b = jnp.zeros((1, w_out), jnp.float32)
            gamma = jnp.ones((w_out,), jnp.float32)
            beta = jnp.zeros((w_out,), jnp.float32)
            self.base_params.append((w, b, gamma, beta))
            in_dim = w_out

        # merged (BaseLearner conv0 | linear_mapper) weight: one MXU pass over f2
        w0, b0, _, _ = self.base_params[0]
        self.w0_dim = w0.shape[1]
        self.wcat = jnp.concatenate([w0, self.map_w], axis=1)               # bf16
        self.bcat = jnp.concatenate(
            [b0, jnp.zeros((1, args.output_dim), jnp.float32)], axis=1)     # f32

    # ---------------- features: fused row-tiled pipeline -----------------
    def get_features(self, x_bcl):
        """x_bcl: (B, C_in, L) -> rows (B*L, feat_dim), row-major in (batch, point)."""
        B, C, L = x_bcl.shape
        x = jnp.transpose(x_bcl, (0, 2, 1)).reshape(B * L, C).astype(jnp.float32)
        M = B * L
        bm = _feature_row_tile(M)

        f1, z, fm, stats = fused_encoder(x, self.enc_w1, self.enc_b1,
                                         self.enc_w2, self.enc_b2,
                                         self.wcat, self.bcat,
                                         block_m=bm, w0=self.w0_dim)
        for li in range(1, len(self.base_params)):
            g_prev, be_prev = self.base_params[li - 1][2], self.base_params[li - 1][3]
            scale, shift = _bn_affine(stats, M, g_prev, be_prev)
            wl, bl, _, _ = self.base_params[li]
            z, stats = bn_conv(z, scale, shift, wl, bl, block_m=bm)
        g_last, be_last = self.base_params[-1][2], self.base_params[-1][3]
        scale, shift = _bn_affine(stats, M, g_last, be_last)
        return bn_concat(f1, fm, z, scale, shift, block_m=bm)     # (B*L, feat_dim) f32

    # ---------------- graph construction -----------------
    def local_constrained_affinity(self, node_feat, valid, k):
        # TODO(synk): torch's F.pairwise_distance adds 1e-6 inside the norm; that
        # ~1e-6 perturbation of the edge weights is dropped here.
        N = node_feat.shape[0]
        x32 = node_feat.astype(jnp.float32)
        norms = jnp.sum(x32 * x32, axis=1, keepdims=True)         # (N, 1) f32
        xb = node_feat.astype(jnp.bfloat16)                       # bf16 MXU operands
        xt = xb.T                                                 # (D, N), no in-kernel transpose
        bn = _nn_row_block(N)
        thr = pallas_knn_threshold(xb, xt, norms, valid,
                                   sigma=self.sigma, kplus1=k + 1, block_n=bn)
        A, d = pallas_knn_graph(xb, xt, norms, valid, thr,
                                sigma=self.sigma, block_n=bn)
        return A, d

    def label_propagate(self, A, d, Y, alpha=0.99):
        eps = float(np.finfo(float).eps)
        dinv = jnp.sqrt(1.0 / (d + eps))                          # (N, 1)
        N = A.shape[0]
        bn = _nn_row_block(N)
        n_iters = int(min(N, 128))
        return _cg_label_propagate(A, Y, dinv, alpha=float(alpha), eps=eps,
                                   n_iters=n_iters, block_n=int(bn))

    def cross_entropy(self, logit_rows, query_y):
        labels = jnp.asarray(query_y).reshape(-1)
        return pallas_cross_entropy(logit_rows, labels)

    # ---------------- forward -----------------
    def forward(self, support_x, support_y, query_x, query_y):
        n_way, k_shot = self.n_way, self.k_shot
        C, L = self.in_channels, self.n_points

        sx = support_x.reshape(n_way * k_shot, C, L)
        support_feat = self.get_features(sx).reshape(n_way, k_shot, L, self.feat_dim)
        query_feat = self.get_features(query_x)                   # (n_q * L, feat_dim)

        fg_mask = np.asarray(support_y)
        bg_mask = np.logical_not(fg_mask)
        sf_np = np.asarray(support_feat)
        fg_protos, fg_labels = get_fg_prototypes(
            sf_np, fg_mask, self.n_subprototypes, n_way, self.n_classes, self.feat_dim)
        bg_protos, bg_labels = get_bg_prototypes(
            sf_np, bg_mask, self.n_subprototypes, self.n_classes, self.feat_dim)

        if bg_protos is not None and bg_labels is not None:
            prototypes = np.concatenate([bg_protos, fg_protos], 0)
            proto_labels = np.concatenate([bg_labels, fg_labels], 0)
        else:
            prototypes, proto_labels = fg_protos, fg_labels

        # static-shape node layout: [protos | pad to P_max | query | pad to 128*]
        p_real = prototypes.shape[0]
        p_max = self.n_classes * self.n_subprototypes             # prototype upper bound
        assert p_real <= p_max
        n_q_rows = query_feat.shape[0]
        n_pad = _round_up(p_max + n_q_rows, 128)

        node_feat = jnp.zeros((n_pad, self.feat_dim), jnp.float32)
        node_feat = node_feat.at[:p_real].set(jnp.asarray(prototypes))
        node_feat = node_feat.at[p_max:p_max + n_q_rows].set(query_feat)

        valid_np = np.zeros((n_pad, 1), np.float32)
        valid_np[:p_real] = 1.0
        valid_np[p_max:p_max + n_q_rows] = 1.0
        valid = jnp.asarray(valid_np)

        c_pad = _round_up(self.n_classes, 128)                    # lane-dense label columns
        y_np = np.zeros((n_pad, c_pad), np.float32)
        y_np[:p_real, :self.n_classes] = proto_labels
        Y = jnp.asarray(y_np)

        A, d = self.local_constrained_affinity(node_feat, valid, self.k_connect)
        Z = self.label_propagate(A, d, Y)

        query_pred_rows = Z[p_max:p_max + n_q_rows, :self.n_classes]
        n_queries = query_y.shape[0]
        query_pred = query_pred_rows.reshape(
            n_queries, query_y.shape[1], self.n_classes).transpose(0, 2, 1)
        loss = self.cross_entropy(query_pred_rows, query_y)
        return query_pred, loss


# ---------------------------------------------------------------------------
# Main
# ---------------------------------------------------------------------------
if __name__ == "__main__":
    class Args:
        n_way = 2
        k_shot = 1
        pc_in_dim = 4
        pc_npts = 128
        use_attention = False
        n_subprototypes = 8
        k_connect = 10
        sigma = 1.0
        edgeconv_widths = [[16, 32]]
        dgcnn_mlp_widths = [32, 64]
        base_widths = [32, 32]
        output_dim = 32
        dgcnn_k = 8

    args = Args()
    key = jax.random.PRNGKey(0)
    k1, k2, k3, k4 = jax.random.split(key, 4)
    support_x = jax.random.normal(k1, (args.n_way, args.k_shot, args.pc_in_dim, args.pc_npts), jnp.float32)
    support_y = (jax.random.uniform(k2, (args.n_way, args.k_shot, args.pc_npts)) > 0.5).astype(jnp.int32)
    query_x = jax.random.normal(k3, (2, args.pc_in_dim, args.pc_npts), jnp.float32)
    query_y = jax.random.randint(k4, (2, args.pc_npts), 0, args.n_way + 1)

    model = MPTIPallas(args, jax.random.PRNGKey(42))
    query_pred, loss = model.forward(support_x, support_y, query_x, query_y)
    jax.block_until_ready(query_pred)
    jax.block_until_ready(loss)

    assert query_pred.shape == (2, args.n_way + 1, args.pc_npts)
    assert np.isfinite(float(loss))
    print("KERNEL_OK")
</pallas_src>

<mosaic_0001>
module attributes {stable_mosaic.version = 11 : i64} {
  func.func @_encoder_fused_kernel(%arg0: i32, %arg1: memref<128x4xf32, #tpu.memory_space<vmem>>, %arg2: memref<4x32xbf16, #tpu.memory_space<vmem>>, %arg3: memref<1x32xf32, #tpu.memory_space<vmem>>, %arg4: memref<32x64xbf16, #tpu.memory_space<vmem>>, %arg5: memref<1x64xf32, #tpu.memory_space<vmem>>, %arg6: memref<64x64xbf16, #tpu.memory_space<vmem>>, %arg7: memref<1x64xf32, #tpu.memory_space<vmem>>, %arg8: memref<128x32xbf16, #tpu.memory_space<vmem>>, %arg9: memref<128x32xbf16, #tpu.memory_space<vmem>>, %arg10: memref<128x32xbf16, #tpu.memory_space<vmem>>, %arg11: memref<1x2x32xf32, #tpu.memory_space<vmem>>) attributes {dimension_semantics = [#tpu.dimension_semantics<parallel>], iteration_bounds = array<i64: 2>, scalar_prefetch = 0 : i64, scratch_operands = 0 : i64, tpu.core_type = #tpu.core_type<tc>, window_params = [{transform_indices = @transform_0, window_bounds = array<i64: 128, 4>}, {pipeline_mode = #tpu.pipeline_mode<synchronous>, transform_indices = @transform_1, window_bounds = array<i64: 4, 32>}, {pipeline_mode = #tpu.pipeline_mode<synchronous>, transform_indices = @transform_2, window_bounds = array<i64: 1, 32>}, {pipeline_mode = #tpu.pipeline_mode<synchronous>, transform_indices = @transform_3, window_bounds = array<i64: 32, 64>}, {pipeline_mode = #tpu.pipeline_mode<synchronous>, transform_indices = @transform_4, window_bounds = array<i64: 1, 64>}, {pipeline_mode = #tpu.pipeline_mode<synchronous>, transform_indices = @transform_5, window_bounds = array<i64: 64, 64>}, {pipeline_mode = #tpu.pipeline_mode<synchronous>, transform_indices = @transform_6, window_bounds = array<i64: 1, 64>}, {transform_indices = @transform_7, window_bounds = array<i64: 128, 32>}, {transform_indices = @transform_8, window_bounds = array<i64: 128, 32>}, {transform_indices = @transform_9, window_bounds = array<i64: 128, 32>}, {transform_indices = @transform_10, window_bounds = array<i64: 1, 2, 32>}]} {
    %c0 = arith.constant 0 : index
    %c0_0 = arith.constant 0 : index
    %0 = vector.load %arg1[%c0, %c0_0] : memref<128x4xf32, #tpu.memory_space<vmem>>, vector<128x4xf32>
    %1 = arith.truncf %0 : vector<128x4xf32> to vector<128x4xbf16>
    %c0_1 = arith.constant 0 : index
    %c0_2 = arith.constant 0 : index
    %2 = vector.load %arg2[%c0_1, %c0_2] : memref<4x32xbf16, #tpu.memory_space<vmem>>, vector<4x32xbf16>
    %cst = arith.constant dense<0.000000e+00> : vector<128x32xf32>
    %3 = tpu.matmul %1, %2, %cst {dimension_numbers = #tpu.dot_dimension_numbers<[1], [0], [0], [1], [0, 0, 1, 1], [], []>} : vector<128x4xbf16>, vector<4x32xbf16>, vector<128x32xf32> -> vector<128x32xf32>
    %c0_3 = arith.constant 0 : index
    %c0_4 = arith.constant 0 : index
    %4 = vector.load %arg3[%c0_3, %c0_4] : memref<1x32xf32, #tpu.memory_space<vmem>>, vector<1x32xf32>
    %5 = vector.broadcast %4 : vector<1x32xf32> to vector<128x32xf32>
    %6 = arith.addf %3, %5 : vector<128x32xf32>
    %cst_5 = arith.constant 0.000000e+00 : f32
    %7 = vector.broadcast %cst_5 : f32 to vector<128x32xf32>
    %8 = arith.maximumf %6, %7 : vector<128x32xf32>
    %9 = arith.truncf %8 : vector<128x32xf32> to vector<128x32xbf16>
    %c0_6 = arith.constant 0 : index
    %c0_7 = arith.constant 0 : index
    %10 = vector.load %arg4[%c0_6, %c0_7] : memref<32x64xbf16, #tpu.memory_space<vmem>>, vector<32x64xbf16>
    %cst_8 = arith.constant dense<0.000000e+00> : vector<128x64xf32>
    %11 = tpu.matmul %9, %10, %cst_8 {dimension_numbers = #tpu.dot_dimension_numbers<[1], [0], [0], [1], [0, 0, 1, 1], [], []>} : vector<128x32xbf16>, vector<32x64xbf16>, vector<128x64xf32> -> vector<128x64xf32>
    %c0_9 = arith.constant 0 : index
    %c0_10 = arith.constant 0 : index
    %12 = vector.load %arg5[%c0_9, %c0_10] : memref<1x64xf32, #tpu.memory_space<vmem>>, vector<1x64xf32>
    %13 = vector.broadcast %12 : vector<1x64xf32> to vector<128x64xf32>
    %14 = arith.addf %11, %13 : vector<128x64xf32>
    %cst_11 = arith.constant 0.000000e+00 : f32
    %15 = vector.broadcast %cst_11 : f32 to vector<128x64xf32>
    %16 = arith.maximumf %14, %15 : vector<128x64xf32>
    %17 = arith.truncf %16 : vector<128x64xf32> to vector<128x64xbf16>
    %c0_12 = arith.constant 0 : index
    %c0_13 = arith.constant 0 : index
    %18 = vector.load %arg6[%c0_12, %c0_13] : memref<64x64xbf16, #tpu.memory_space<vmem>>, vector<64x64xbf16>
    %cst_14 = arith.constant dense<0.000000e+00> : vector<128x64xf32>
    %19 = tpu.matmul %17, %18, %cst_14 {dimension_numbers = #tpu.dot_dimension_numbers<[1], [0], [0], [1], [0, 0, 1, 1], [], []>} : vector<128x64xbf16>, vector<64x64xbf16>, vector<128x64xf32> -> vector<128x64xf32>
    %c0_15 = arith.constant 0 : index
    %c0_16 = arith.constant 0 : index
    %20 = vector.load %arg7[%c0_15, %c0_16] : memref<1x64xf32, #tpu.memory_space<vmem>>, vector<1x64xf32>
    %21 = vector.broadcast %20 : vector<1x64xf32> to vector<128x64xf32>
    %22 = arith.addf %19, %21 : vector<128x64xf32>
    %23 = vector.extract_strided_slice %22 {offsets = [0, 0], sizes = [128, 32], strides = [1, 1]} : vector<128x64xf32> to vector<128x32xf32>
    %24 = vector.extract_strided_slice %22 {offsets = [0, 32], sizes = [128, 32], strides = [1, 1]} : vector<128x64xf32> to vector<128x32xf32>
    %25 = arith.truncf %8 : vector<128x32xf32> to vector<128x32xbf16>
    %c0_17 = arith.constant 0 : index
    %c0_18 = arith.constant 0 : index
    %26 = vector.load %arg8[%c0_17, %c0_18] : memref<128x32xbf16, #tpu.memory_space<vmem>>, vector<128x32xbf16>
    tpu.vector_store %arg8[%c0_17, %c0_18], %25 {strides = array<i32>} : memref<128x32xbf16, #tpu.memory_space<vmem>>, vector<128x32xbf16>,
    %27 = arith.truncf %23 : vector<128x32xf32> to vector<128x32xbf16>
    %c0_19 = arith.constant 0 : index
    %c0_20 = arith.constant 0 : index
    %28 = vector.load %arg9[%c0_19, %c0_20] : memref<128x32xbf16, #tpu.memory_space<vmem>>, vector<128x32xbf16>
    tpu.vector_store %arg9[%c0_19, %c0_20], %27 {strides = array<i32>} : memref<128x32xbf16, #tpu.memory_space<vmem>>, vector<128x32xbf16>,
    %29 = arith.truncf %24 : vector<128x32xf32> to vector<128x32xbf16>
    %c0_21 = arith.constant 0 : index
    %c0_22 = arith.constant 0 : index
    %30 = vector.load %arg10[%c0_21, %c0_22] : memref<128x32xbf16, #tpu.memory_space<vmem>>, vector<128x32xbf16>
    tpu.vector_store %arg10[%c0_21, %c0_22], %29 {strides = array<i32>} : memref<128x32xbf16, #tpu.memory_space<vmem>>, vector<128x32xbf16>,
    %31 = tpu.iota {dimensions = array<i32: 0>} : vector<128x32xi32>
    %c128_i32 = arith.constant 128 : i32
    %32 = arith.muli %arg0, %c128_i32 : i32
    %33 = vector.broadcast %32 : i32 to vector<128x32xi32>
    %34 = arith.addi %31, %33 : vector<128x32xi32>
    %c256_i32 = arith.constant 256 : i32
    %35 = vector.broadcast %c256_i32 : i32 to vector<128x32xi32>
    %36 = arith.cmpi slt, %34, %35 : vector<128x32xi32>
    %cst_23 = arith.constant 0.000000e+00 : f32
    %37 = vector.broadcast %cst_23 : f32 to vector<128x32xf32>
    %38 = arith.select %36, %23, %37 : vector<128x32xi1>, vector<128x32xf32>
    %cst_24 = arith.constant dense<0.000000e+00> : vector<32xf32>
    %39 = vector.multi_reduction <add>, %38, %cst_24 [0] : vector<128x32xf32> to vector<32xf32>
    %40 = vector.shape_cast %39 : vector<32xf32> to vector<1x32xf32>
    %c0_25 = arith.constant 0 : index
    %c0_26 = arith.constant 0 : index
    %c0_27 = arith.constant 0 : index
    %41 = vector.load %arg11[%c0_25, %c0_26, %c0_27] : memref<1x2x32xf32, #tpu.memory_space<vmem>>, vector<1x1x32xf32>
    %42 = vector.shape_cast %41 : vector<1x1x32xf32> to vector<1x32xf32>
    %43 = vector.shape_cast %40 : vector<1x32xf32> to vector<1x1x32xf32>
    tpu.vector_store %arg11[%c0_25, %c0_26, %c0_27], %43 {strides = array<i32>} : memref<1x2x32xf32, #tpu.memory_space<vmem>>, vector<1x1x32xf32>,
    %44 = arith.mulf %38, %38 : vector<128x32xf32>
    %cst_28 = arith.constant dense<0.000000e+00> : vector<32xf32>
    %45 = vector.multi_reduction <add>, %44, %cst_28 [0] : vector<128x32xf32> to vector<32xf32>
    %46 = vector.shape_cast %45 : vector<32xf32> to vector<1x32xf32>
    %c0_29 = arith.constant 0 : index
    %c1 = arith.constant 1 : index
    %c0_30 = arith.constant 0 : index
    %47 = vector.load %arg11[%c0_29, %c1, %c0_30] : memref<1x2x32xf32, #tpu.memory_space<vmem>>, vector<1x1x32xf32>
    %48 = vector.shape_cast %47 : vector<1x1x32xf32> to vector<1x32xf32>
    %49 = vector.shape_cast %46 : vector<1x32xf32> to vector<1x1x32xf32>
    tpu.vector_store %arg11[%c0_29, %c1, %c0_30], %49 {strides = array<i32>} : memref<1x2x32xf32, #tpu.memory_space<vmem>>, vector<1x1x32xf32>,
    return
  }
  func.func @transform_0(%arg0: i32) -> (i32, i32) {
    %c0_i32 = arith.constant 0 : i32
    %c0_i32_0 = arith.constant 0 : i32
    return %arg0, %c0_i32 : i32, i32
  }
  func.func @transform_1(%arg0: i32) -> (i32, i32) {
    %c0_i32 = arith.constant 0 : i32
    %c0_i32_0 = arith.constant 0 : i32
    %c0_i32_1 = arith.constant 0 : i32
    return %c0_i32, %c0_i32_0 : i32, i32
  }
  func.func @transform_2(%arg0: i32) -> (i32, i32) {
    %c0_i32 = arith.constant 0 : i32
    %c0_i32_0 = arith.constant 0 : i32
    %c0_i32_1 = arith.constant 0 : i32
    return %c0_i32, %c0_i32_0 : i32, i32
  }
  func.func @transform_3(%arg0: i32) -> (i32, i32) {
    %c0_i32 = arith.constant 0 : i32
    %c0_i32_0 = arith.constant 0 : i32
    %c0_i32_1 = arith.constant 0 : i32
    return %c0_i32, %c0_i32_0 : i32, i32
  }
  func.func @transform_4(%arg0: i32) -> (i32, i32) {
    %c0_i32 = arith.constant 0 : i32
    %c0_i32_0 = arith.constant 0 : i32
    %c0_i32_1 = arith.constant 0 : i32
    return %c0_i32, %c0_i32_0 : i32, i32
  }
  func.func @transform_5(%arg0: i32) -> (i32, i32) {
    %c0_i32 = arith.constant 0 : i32
    %c0_i32_0 = arith.constant 0 : i32
    %c0_i32_1 = arith.constant 0 : i32
    return %c0_i32, %c0_i32_0 : i32, i32
  }
  func.func @transform_6(%arg0: i32) -> (i32, i32) {
    %c0_i32 = arith.constant 0 : i32
    %c0_i32_0 = arith.constant 0 : i32
    %c0_i32_1 = arith.constant 0 : i32
    return %c0_i32, %c0_i32_0 : i32, i32
  }
  func.func @transform_7(%arg0: i32) -> (i32, i32) {
    %c0_i32 = arith.constant 0 : i32
    %c0_i32_0 = arith.constant 0 : i32
    return %arg0, %c0_i32 : i32, i32
  }
  func.func @transform_8(%arg0: i32) -> (i32, i32) {
    %c0_i32 = arith.constant 0 : i32
    %c0_i32_0 = arith.constant 0 : i32
    return %arg0, %c0_i32 : i32, i32
  }
  func.func @transform_9(%arg0: i32) -> (i32, i32) {
    %c0_i32 = arith.constant 0 : i32
    %c0_i32_0 = arith.constant 0 : i32
    return %arg0, %c0_i32 : i32, i32
  }
  func.func @transform_10(%arg0: i32) -> (i32, i32, i32) {
    %c0_i32 = arith.constant 0 : i32
    %c0_i32_0 = arith.constant 0 : i32
    %c0_i32_1 = arith.constant 0 : i32
    return %arg0, %c0_i32, %c0_i32_0 : i32, i32, i32
  }
}

</mosaic_0001>

<llo_original>
// kernel: tpu_custom_call.1
$region0: #{tpu_custom_call.1}
  #allocation0 [shape = 'u32[]', space=smem, size = 0x4, offset = 0x4, fixed_abs, tag = 'smem constant byte address 0x4 - core index']
  #allocation1 [shape = 'u32[72,128]{1,0:T(1,128)}', space=vmem, size = 0x9000, scoped, tag = 'internal scratch']
  %s0 = inlined_call_operand.vmem [shape: f32[256,4], index: 0, kind: input, shape index: {}]
  %s1 = inlined_call_operand.vmem [shape: bf16[4,32], index: 1, kind: input, shape index: {}]
  %s2 = inlined_call_operand.vmem [shape: f32[1,32], index: 2, kind: input, shape index: {}]
  %s3 = inlined_call_operand.vmem [shape: bf16[32,64], index: 3, kind: input, shape index: {}]
  %s4 = inlined_call_operand.vmem [shape: f32[1,64], index: 4, kind: input, shape index: {}]
  %s5 = inlined_call_operand.vmem [shape: bf16[64,64], index: 5, kind: input, shape index: {}]
  %s6 = inlined_call_operand.vmem [shape: f32[1,64], index: 6, kind: input, shape index: {}]
  %s7 = inlined_call_operand.vmem [shape: bf16[256,32], index: 7, kind: output, shape index: {0}]
  %s8 = inlined_call_operand.vmem [shape: bf16[256,32], index: 8, kind: output, shape index: {1}]
  %s9 = inlined_call_operand.vmem [shape: bf16[256,32], index: 9, kind: output, shape index: {2}]
  %s10 = inlined_call_operand.hbm [shape: f32[2,2,32], index: 10, kind: output, shape index: {3}]
  %11 = xla_tuple %s7, %s8, %s9, %s10
  %s12 = sld [smem:[#allocation0]]
  $region85: #{tpu_custom_call.1} parent=0
    _
  %s14 = ssub.s32 1, %s12
  %s15 = scalar_select 0, %s14, %s12
  $region1: #{tpu_custom_call.1} parent=0
    #allocation2 [shape = 'u8[2048]{0}', space=vmem, size = 0x800, scoped, tag = 'output window, operand 3']
    #allocation3 [shape = 's32[2]{0}', space=sflag, size = 0x8, scoped, tag = 'scoped memory for tpu_custom_call.1']
    %16 = vsyncpa [#allocation3], 0
    %s17 = scalar_lea.sflag [#allocation3], 1
    %18 = vsyncpa %s17, 0
    loop: start=0, step=1, limit=4
    $region2: #{tpu_custom_call.1} parent=1 // loop_pre_header
      _
    $region3: #{tpu_custom_call.1} parent=1 // loop_header
      %s20 = sphi 0, %s24
      %p21 = scmp.ge.s32.totalorder %s20, 4
      %s30 = sphi 0, %s32
      %s33 = sphi 0, %s30
      %s34 = sphi 0, %s33
      %s50 = sphi 0, %s34
      %s54 = sphi 0, %s54
      %s56 = sphi 0, %s54
      %s57 = sphi 0, %s56
      %s71 = sphi 0, %s57
      %s75 = sphi 0, %s75
      %s77 = sphi 0, %s75
      %s78 = sphi 0, %s77
      %s92 = sphi 0, %s78
      %s96 = sphi 0, %s96
      %s98 = sphi 0, %s96
      %s99 = sphi 0, %s98
      %s113 = sphi 0, %s99
      %s117 = sphi 0, %s117
      %s119 = sphi 0, %s117
      %s120 = sphi 0, %s119
      %s134 = sphi 0, %s120
      %s138 = sphi 0, %s138
      %s140 = sphi 0, %s138
      %s141 = sphi 0, %s140
      %s155 = sphi 0, %s141
      %s159 = sphi 0, %s159
      %s161 = sphi 0, %s159
      %s162 = sphi 0, %s161
      %s176 = sphi 0, %s162
      %s182 = sphi 0, %s184
      %s185 = sphi 0, %s182
      %s186 = sphi 0, %s185
      %s202 = sphi 0, %s186
      %s208 = sphi 0, %s210
      %s211 = sphi 0, %s208
      %s212 = sphi 0, %s211
      %s228 = sphi 0, %s212
      %s234 = sphi 0, %s236
      %s237 = sphi 0, %s234
      %s238 = sphi 0, %s237
      %s254 = sphi 0, %s238
      %s260 = sphi 0, %s262
      %s263 = sphi 0, %s260
      %s264 = sphi 0, %s263
      %s280 = sphi 0, %s264
    $region4: #{tpu_custom_call.1} parent=1 // loop_header_branch
      %23 = sbr.rel (%p21) target = $region8
    $region5: #{tpu_custom_call.1} parent=1 // loop_body
      %s25 = ssub.s32 %s20, 1
      %s26 = ssub.s32 %s20, 2
      %s27 = sadd.s32 %s20, 1
      %s28 = ssub.s32 %s20, %s27
      %p29 = scmp.eq.s32.totalorder %s28, 0
      %s31 = sadd.s32 %s30, 1
      %s32 = scalar_select %p29, %s30, %s31
      %p35 = pneg %p29
      %p36 = scmp.eq.s32.totalorder %s20, 1
      %p37 = por %p35, %p36
      %p38 = scmp.ne.s32.totalorder %s30, %s33
      %p39 = scmp.eq.s32.totalorder %s20, 0
      %p40 = por %p38, %p39
      %p41 = scmp.ne.s32.totalorder %s30, %s33
      %p42 = scmp.eq.s32.totalorder %s25, 1
      %p43 = por %p41, %p42
      %p44 = scmp.ne.s32.totalorder %s33, %s34
      %p45 = scmp.eq.s32.totalorder %s25, 0
      %p46 = por %p44, %p45
      %p47 = scmp.ne.s32.totalorder %s33, %s34
      %p48 = scmp.eq.s32.totalorder %s26, 1
      %p49 = por %p47, %p48
      %p51 = scmp.ne.s32.totalorder %s34, %s50
      %p52 = scmp.eq.s32.totalorder %s26, 0
      %p53 = por %p51, %p52
      %s55 = sadd.s32 %s54, 1
      %p58 = scmp.eq.s32.totalorder %s20, 1
      %p59 = scmp.ne.s32.totalorder %s54, %s56
      %p60 = scmp.eq.s32.totalorder %s20, 0
      %p61 = por %p59, %p60
      %p62 = scmp.ne.s32.totalorder %s54, %s56
      %p63 = scmp.eq.s32.totalorder %s25, 1
      %p64 = por %p62, %p63
      %p65 = scmp.ne.s32.totalorder %s56, %s57
      %p66 = scmp.eq.s32.totalorder %s25, 0
      %p67 = por %p65, %p66
      %p68 = scmp.ne.s32.totalorder %s56, %s57
      %p69 = scmp.eq.s32.totalorder %s26, 1
      %p70 = por %p68, %p69
      %p72 = scmp.ne.s32.totalorder %s57, %s71
      %p73 = scmp.eq.s32.totalorder %s26, 0
      %p74 = por %p72, %p73
      %s76 = sadd.s32 %s75, 1
      %p79 = scmp.eq.s32.totalorder %s20, 1
      %p80 = scmp.ne.s32.totalorder %s75, %s77
      %p81 = scmp.eq.s32.totalorder %s20, 0
      %p82 = por %p80, %p81
      %p83 = scmp.ne.s32.totalorder %s75, %s77
      %p84 = scmp.eq.s32.totalorder %s25, 1
      %p85 = por %p83, %p84
      %p86 = scmp.ne.s32.totalorder %s77, %s78
      %p87 = scmp.eq.s32.totalorder %s25, 0
      %p88 = por %p86, %p87
      %p89 = scmp.ne.s32.totalorder %s77, %s78
      %p90 = scmp.eq.s32.totalorder %s26, 1
      %p91 = por %p89, %p90
      %p93 = scmp.ne.s32.totalorder %s78, %s92
      %p94 = scmp.eq.s32.totalorder %s26, 0
      %p95 = por %p93, %p94
      %s97 = sadd.s32 %s96, 1
      %p100 = scmp.eq.s32.totalorder %s20, 1
      %p101 = scmp.ne.s32.totalorder %s96, %s98
      %p102 = scmp.eq.s32.totalorder %s20, 0
      %p103 = por %p101, %p102
      %p104 = scmp.ne.s32.totalorder %s96, %s98
      %p105 = scmp.eq.s32.totalorder %s25, 1
      %p106 = por %p104, %p105
      %p107 = scmp.ne.s32.totalorder %s98, %s99
      %p108 = scmp.eq.s32.totalorder %s25, 0
      %p109 = por %p107, %p108
      %p110 = scmp.ne.s32.totalorder %s98, %s99
      %p111 = scmp.eq.s32.totalorder %s26, 1
      %p112 = por %p110, %p111
      %p114 = scmp.ne.s32.totalorder %s99, %s113
      %p115 = scmp.eq.s32.totalorder %s26, 0
      %p116 = por %p114, %p115
      %s118 = sadd.s32 %s117, 1
      %p121 = scmp.eq.s32.totalorder %s20, 1
      %p122 = scmp.ne.s32.totalorder %s117, %s119
      %p123 = scmp.eq.s32.totalorder %s20, 0
      %p124 = por %p122, %p123
      %p125 = scmp.ne.s32.totalorder %s117, %s119
      %p126 = scmp.eq.s32.totalorder %s25, 1
      %p127 = por %p125, %p126
      %p128 = scmp.ne.s32.totalorder %s119, %s120
      %p129 = scmp.eq.s32.totalorder %s25, 0
      %p130 = por %p128, %p129
      %p131 = scmp.ne.s32.totalorder %s119, %s120
      %p132 = scmp.eq.s32.totalorder %s26, 1
      %p133 = por %p131, %p132
      %p135 = scmp.ne.s32.totalorder %s120, %s134
      %p136 = scmp.eq.s32.totalorder %s26, 0
      %p137 = por %p135, %p136
      %s139 = sadd.s32 %s138, 1
      %p142 = scmp.eq.s32.totalorder %s20, 1
      %p143 = scmp.ne.s32.totalorder %s138, %s140
      %p144 = scmp.eq.s32.totalorder %s20, 0
      %p145 = por %p143, %p144
      %p146 = scmp.ne.s32.totalorder %s138, %s140
      %p147 = scmp.eq.s32.totalorder %s25, 1
      %p148 = por %p146, %p147
      %p149 = scmp.ne.s32.totalorder %s140, %s141
      %p150 = scmp.eq.s32.totalorder %s25, 0
      %p151 = por %p149, %p150
      %p152 = scmp.ne.s32.totalorder %s140, %s141
      %p153 = scmp.eq.s32.totalorder %s26, 1
      %p154 = por %p152, %p153
      %p156 = scmp.ne.s32.totalorder %s141, %s155
      %p157 = scmp.eq.s32.totalorder %s26, 0
      %p158 = por %p156, %p157
      %s160 = sadd.s32 %s159, 1
      %p163 = scmp.eq.s32.totalorder %s20, 1
      %p164 = scmp.ne.s32.totalorder %s159, %s161
      %p165 = scmp.eq.s32.totalorder %s20, 0
      %p166 = por %p164, %p165
      %p167 = scmp.ne.s32.totalorder %s159, %s161
      %p168 = scmp.eq.s32.totalorder %s25, 1
      %p169 = por %p167, %p168
      %p170 = scmp.ne.s32.totalorder %s161, %s162
      %p171 = scmp.eq.s32.totalorder %s25, 0
      %p172 = por %p170, %p171
      %p173 = scmp.ne.s32.totalorder %s161, %s162
      %p174 = scmp.eq.s32.totalorder %s26, 1
      %p175 = por %p173, %p174
      %p177 = scmp.ne.s32.totalorder %s162, %s176
      %p178 = scmp.eq.s32.totalorder %s26, 0
      %p179 = por %p177, %p178
      %s180 = ssub.s32 %s20, %s27
      %p181 = scmp.eq.s32.totalorder %s180, 0
      %s183 = sadd.s32 %s182, 1
      %s184 = scalar_select %p181, %s182, %s183
      %p187 = pneg %p181
      %p188 = scmp.eq.s32.totalorder %s20, 1
      %p189 = por %p187, %p188
      %p190 = scmp.ne.s32.totalorder %s182, %s185
      %p191 = scmp.eq.s32.totalorder %s20, 0
      %p192 = por %p190, %p191
      %p193 = scmp.ne.s32.totalorder %s182, %s185
      %p194 = scmp.eq.s32.totalorder %s25, 1
      %p195 = por %p193, %p194
      %p196 = scmp.ne.s32.totalorder %s185, %s186
      %p197 = scmp.eq.s32.totalorder %s25, 0
      %p198 = por %p196, %p197
      %p199 = scmp.ne.s32.totalorder %s185, %s186
      %p200 = scmp.eq.s32.totalorder %s26, 1
      %p201 = por %p199, %p200
      %p203 = scmp.ne.s32.totalorder %s186, %s202
      %p204 = scmp.eq.s32.totalorder %s26, 0
      %p205 = por %p203, %p204
      %s206 = ssub.s32 %s20, %s27
      %p207 = scmp.eq.s32.totalorder %s206, 0
      %s209 = sadd.s32 %s208, 1
      %s210 = scalar_select %p207, %s208, %s209
      %p213 = pneg %p207
      %p214 = scmp.eq.s32.totalorder %s20, 1
      %p215 = por %p213, %p214
      %p216 = scmp.ne.s32.totalorder %s208, %s211
      %p217 = scmp.eq.s32.totalorder %s20, 0
      %p218 = por %p216, %p217
      %p219 = scmp.ne.s32.totalorder %s208, %s211
      %p220 = scmp.eq.s32.totalorder %s25, 1
      %p221 = por %p219, %p220
      %p222 = scmp.ne.s32.totalorder %s211, %s212
      %p223 = scmp.eq.s32.totalorder %s25, 0
      %p224 = por %p222, %p223
      %p225 = scmp.ne.s32.totalorder %s211, %s212
      %p226 = scmp.eq.s32.totalorder %s26, 1
      %p227 = por %p225, %p226
      %p229 = scmp.ne.s32.totalorder %s212, %s228
      %p230 = scmp.eq.s32.totalorder %s26, 0
      %p231 = por %p229, %p230
      %s232 = ssub.s32 %s20, %s27
      %p233 = scmp.eq.s32.totalorder %s232, 0
      %s235 = sadd.s32 %s234, 1
      %s236 = scalar_select %p233, %s234, %s235
      %p239 = pneg %p233
      %p240 = scmp.eq.s32.totalorder %s20, 1
      %p241 = por %p239, %p240
      %p242 = scmp.ne.s32.totalorder %s234, %s237
      %p243 = scmp.eq.s32.totalorder %s20, 0
      %p244 = por %p242, %p243
      %p245 = scmp.ne.s32.totalorder %s234, %s237
      %p246 = scmp.eq.s32.totalorder %s25, 1
      %p247 = por %p245, %p246
      %p248 = scmp.ne.s32.totalorder %s237, %s238
      %p249 = scmp.eq.s32.totalorder %s25, 0
      %p250 = por %p248, %p249
      %p251 = scmp.ne.s32.totalorder %s237, %s238
      %p252 = scmp.eq.s32.totalorder %s26, 1
      %p253 = por %p251, %p252
      %p255 = scmp.ne.s32.totalorder %s238, %s254
      %p256 = scmp.eq.s32.totalorder %s26, 0
      %p257 = por %p255, %p256
      %s258 = ssub.s32 %s20, %s27
      %p259 = scmp.eq.s32.totalorder %s258, 0
      %s261 = sadd.s32 %s260, 1
      %s262 = scalar_select %p259, %s260, %s261
      %p265 = pneg %p259
      %p266 = scmp.eq.s32.totalorder %s20, 1
      %p267 = por %p265, %p266
      %p268 = scmp.ne.s32.totalorder %s260, %s263
      %p269 = scmp.eq.s32.totalorder %s20, 0
      %p270 = por %p268, %p269
      %p271 = scmp.ne.s32.totalorder %s260, %s263
      %p272 = scmp.eq.s32.totalorder %s25, 1
      %p273 = por %p271, %p272
      %p274 = scmp.ne.s32.totalorder %s263, %s264
      %p275 = scmp.eq.s32.totalorder %s25, 0
      %p276 = por %p274, %p275
      %p277 = scmp.ne.s32.totalorder %s263, %s264
      %p278 = scmp.eq.s32.totalorder %s26, 1
      %p279 = por %p277, %p278
      %p281 = scmp.ne.s32.totalorder %s264, %s280
      %p282 = scmp.eq.s32.totalorder %s26, 0
      %p283 = por %p281, %p282
      %p284 = scmp.le.s32.totalorder 1, %s20
      %p285 = scmp.lt.s32.totalorder %s20, 3
      %p286 = pnand %p284, %p285
      %p287 = pneg %p286
      // Predicated region
      $region9: #{tpu_custom_call.1} parent=5 // pred_check
        _
      $region10: #{tpu_custom_call.1} parent=5 // pred_check_branch
        %289 = sbr.rel (%p286) target = $region12
      $region11: #{tpu_custom_call.1} parent=5 // pred_region
        %s290 = ssub.s32 %s20, 1
        // Predicated region
        $region13: #{tpu_custom_call.1} parent=11 // pred_check
          %p291 = pneg %p67
        $region14: #{tpu_custom_call.1} parent=11 // pred_check_branch
          %293 = sbr.rel (%p291) target = $region16
        $region15: #{tpu_custom_call.1} parent=11 // pred_region
          _
        $region16: #{tpu_custom_call.1} parent=11 // pred_fallthru
          _
        // Predicated region
        $region17: #{tpu_custom_call.1} parent=11 // pred_check
          %p294 = pneg %p88
        $region18: #{tpu_custom_call.1} parent=11 // pred_check_branch
          %296 = sbr.rel (%p294) target = $region20
        $region19: #{tpu_custom_call.1} parent=11 // pred_region
          _
        $region20: #{tpu_custom_call.1} parent=11 // pred_fallthru
          _
        // Predicated region
        $region21: #{tpu_custom_call.1} parent=11 // pred_check
          %p297 = pneg %p109
        $region22: #{tpu_custom_call.1} parent=11 // pred_check_branch
          %299 = sbr.rel (%p297) target = $region24
        $region23: #{tpu_custom_call.1} parent=11 // pred_region
          _
        $region24: #{tpu_custom_call.1} parent=11 // pred_fallthru
          _
        // Predicated region
        $region25: #{tpu_custom_call.1} parent=11 // pred_check
          %p300 = pneg %p130
        $region26: #{tpu_custom_call.1} parent=11 // pred_check_branch
          %302 = sbr.rel (%p300) target = $region28
        $region27: #{tpu_custom_call.1} parent=11 // pred_region
          _
        $region28: #{tpu_custom_call.1} parent=11 // pred_fallthru
          _
        // Predicated region
        $region29: #{tpu_custom_call.1} parent=11 // pred_check
          %p303 = pneg %p151
        $region30: #{tpu_custom_call.1} parent=11 // pred_check_branch
          %305 = sbr.rel (%p303) target = $region32
        $region31: #{tpu_custom_call.1} parent=11 // pred_region
          _
        $region32: #{tpu_custom_call.1} parent=11 // pred_fallthru
          _
        // Predicated region
        $region33: #{tpu_custom_call.1} parent=11 // pred_check
          %p306 = pneg %p172
        $region34: #{tpu_custom_call.1} parent=11 // pred_check_branch
          %308 = sbr.rel (%p306) target = $region36
        $region35: #{tpu_custom_call.1} parent=11 // pred_region
          _
        $region36: #{tpu_custom_call.1} parent=11 // pred_fallthru
          _
      $region12: #{tpu_custom_call.1} parent=5 // pred_fallthru
        _
      %p309 = scmp.lt.s32.totalorder %s20, 2
      // Predicated region
      $region37: #{tpu_custom_call.1} parent=5 // pred_check
        %p310 = pneg %p309
      $region38: #{tpu_custom_call.1} parent=5 // pred_check_branch
        %312 = sbr.rel (%p310) target = $region40
      $region39: #{tpu_custom_call.1} parent=5 // pred_region
        // Predicated region
        $region41: #{tpu_custom_call.1} parent=39 // pred_check
          %p313 = pneg %p40
        $region42: #{tpu_custom_call.1} parent=39 // pred_check_branch
          %315 = sbr.rel (%p313) target = $region44
        $region43: #{tpu_custom_call.1} parent=39 // pred_region
          %s316 = smul.u32 16, %s20
          %p317 = scmp.lt.s32.totalorder %s316, 31
          %s318 = scalar_select %p317, %s316, 31
          %s319 = smul.addr %s318, 8
          %s320 = scalar_lea.vmem %s0, %s319
          %s321 = smul.u32 16, %s20
        $region44: #{tpu_custom_call.1} parent=39 // pred_fallthru
          _
      $region40: #{tpu_custom_call.1} parent=5 // pred_fallthru
        _
      %p322 = scmp.le.s32.totalorder 1, %s20
      %p323 = scmp.lt.s32.totalorder %s20, 3
      %p324 = pnand %p322, %p323
      %p325 = pneg %p324
      // Predicated region
      $region45: #{tpu_custom_call.1} parent=5 // pred_check
        _
      $region46: #{tpu_custom_call.1} parent=5 // pred_check_branch
        %327 = sbr.rel (%p324) target = $region48
      $region47: #{tpu_custom_call.1} parent=5 // pred_region
        %s328 = ssub.s32 %s20, 1
        %s329 = smul.u32 16, %s25
        %p330 = scmp.lt.s32.totalorder %s329, 31
        %s331 = scalar_select %p330, %s329, 31
        %s332 = smul.addr %s331, 8
        %s333 = scalar_lea.vmem %s0, %s332
        %p334 = pneg %p46
        %p335 = pneg %p43
        %p336 = pneg %p67
        %p337 = pneg %p64
        %p338 = pneg %p88
        %p339 = pneg %p85
        %p340 = pneg %p109
        %p341 = pneg %p106
        %p342 = pneg %p130
        %p343 = pneg %p127
        %p344 = pneg %p151
        %p345 = pneg %p148
        %p346 = pneg %p172
        %p347 = pneg %p169
        %p348 = pneg %p198
        %p349 = pneg %p195
        %s350 = smul.u32 16, %s25
        %p351 = scmp.lt.s32.totalorder %s350, 31
        %s352 = scalar_select %p351, %s350, 31
        %s353 = smul.addr %s352, 4
        %s354 = scalar_lea.vmem %s7, %s353
        %p355 = pneg %p224
        %p356 = pneg %p221
        %s357 = smul.u32 16, %s25
        %p358 = scmp.lt.s32.totalorder %s357, 31
        %s359 = scalar_select %p358, %s357, 31
        %s360 = smul.addr %s359, 4
        %s361 = scalar_lea.vmem %s8, %s360
        %p362 = pneg %p250
        %p363 = pneg %p247
        %s364 = smul.u32 16, %s25
        %p365 = scmp.lt.s32.totalorder %s364, 31
        %s366 = scalar_select %p365, %s364, 31
        %s367 = smul.addr %s366, 4
        %s368 = scalar_lea.vmem %s9, %s367
        %p369 = pneg %p276
        %p370 = pneg %p273
        %s371 = sand.u32 %s263, 1
        %s372 = scalar_lea.sflag [#allocation3], %s371
        %s373 = sand.u32 %s263, 1
        %s374 = smul.addr %s373, 2
        %s375 = scalar_lea.vmem [#allocation2], %s374
        %s376 = smul.u32 16, %s25
        %p377 = scmp.lt.s32.totalorder %s376, 31
        %s378 = scalar_select %p377, %s376, 31
        %s379 = smul.addr %s378, 8
        %s380 = scalar_lea.vmem %s0, %s379
        %s381 = smul.u32 16, %s25
        %s382 = smul.u32 16, %s25
        %p383 = scmp.lt.s32.totalorder %s382, 31
        %s384 = scalar_select %p383, %s382, 31
        %s385 = smul.addr %s384, 4
        %s386 = scalar_lea.vmem %s7, %s385
        %s387 = smul.u32 16, %s25
        %s388 = smul.u32 16, %s25
        %p389 = scmp.lt.s32.totalorder %s388, 31
        %s390 = scalar_select %p389, %s388, 31
        %s391 = smul.addr %s390, 4
        %s392 = scalar_lea.vmem %s8, %s391
        %s393 = smul.u32 16, %s25
        %s394 = smul.u32 16, %s25
        %p395 = scmp.lt.s32.totalorder %s394, 31
        %s396 = scalar_select %p395, %s394, 31
        %s397 = smul.addr %s396, 4
        %s398 = scalar_lea.vmem %s9, %s397
        %s399 = smul.u32 16, %s25
        %v401 = vld [vmem:[%s380] sm:$0xff]
        %v402 = vld [vmem:[%s380 + $0x8] sm:$0xff]
        %v403 = vld [vmem:[%s380 + $0x10] sm:$0xff]
        %v404 = vld [vmem:[%s380 + $0x18] sm:$0xff]
        %v405 = vld [vmem:[%s380 + $0x20] sm:$0xff]
        %v406 = vld [vmem:[%s380 + $0x28] sm:$0xff]
        %v407 = vld [vmem:[%s380 + $0x30] sm:$0xff]
        %v408 = vld [vmem:[%s380 + $0x38] sm:$0xff]
        %v409 = vld [vmem:[%s380 + $0x40] sm:$0xff]
        %v410 = vld [vmem:[%s380 + $0x48] sm:$0xff]
        %v411 = vld [vmem:[%s380 + $0x50] sm:$0xff]
        %v412 = vld [vmem:[%s380 + $0x58] sm:$0xff]
        %v413 = vld [vmem:[%s380 + $0x60] sm:$0xff]
        %v414 = vld [vmem:[%s380 + $0x68] sm:$0xff]
        %v415 = vld [vmem:[%s380 + $0x70] sm:$0xff]
        %v416 = vld [vmem:[%s380 + $0x78] sm:$0xff]
        %v417 = vpack.c.bf16 %v402, %v401
        %v418 = vpack.c.bf16 %v404, %v403
        %v419 = vpack.c.bf16 %v406, %v405
        %v420 = vpack.c.bf16 %v408, %v407
        %v421 = vpack.c.bf16 %v410, %v409
        %v422 = vpack.c.bf16 %v412, %v411
        %v423 = vpack.c.bf16 %v414, %v413
        %v424 = vpack.c.bf16 %v416, %v415
        %v425 = vld [vmem:[%s1] sm:$0x3]
        %v426 = vld [vmem:[%s2] sm:$0x1]
        %v428 = vperm.slane %v426, 0
        %vm430 = vcmask 31744
        %v432 = vsel %vm430, %v417, 0
        %v435 = vsel %vm430, %v418, 0
        %v438 = vsel %vm430, %v419, 0
        %v441 = vsel %vm430, %v420, 0
        %v444 = vsel %vm430, %v421, 0
        %v447 = vsel %vm430, %v422, 0
        %v450 = vsel %vm430, %v423, 0
        %v453 = vsel %vm430, %v424, 0
        %vm455 = vcmask 1041408
        %v457 = vsel %vm455, %v425, 0
        %459 = vmatpush.bf16.msra.mxu0 0
        %460 = vmatpush.bf16.msra.mxu0 0
        %461 = vmatpush.bf16.msra.mxu0 0
        %462 = vmatpush.bf16.msra.mxu0 0
        %463 = vmatpush.bf16.msra.mxu0 0
        %464 = vmatpush.bf16.msra.mxu0 0
        %465 = vmatpush.bf16.msra.mxu0 0
        %466 = vmatpush.bf16.msra.mxu0 %v457
        %467 = vmatmul.bf16.gmra.mxu0 %v432
        %v468 = vpop.f32.mrf.mxu0
        %v469 = vadd.f32 %v428, %v468
        %v470 = vpop.f32.mrf.mxu0
        %v471 = vadd.f32 %v428, %v470
        %472 = vmatmul.bf16.gmra.mxu0 %v435
        %v473 = vpop.f32.mrf.mxu0
        %v474 = vadd.f32 %v428, %v473
        %v475 = vpop.f32.mrf.mxu0
        %v476 = vadd.f32 %v428, %v475
        %477 = vmatmul.bf16.gmra.mxu0 %v438
        %v478 = vpop.f32.mrf.mxu0
        %v479 = vadd.f32 %v428, %v478
        %v480 = vpop.f32.mrf.mxu0
        %v481 = vadd.f32 %v428, %v480
        %482 = vmatmul.bf16.gmra.mxu0 %v441
        %v483 = vpop.f32.mrf.mxu0
        %v484 = vadd.f32 %v428, %v483
        %v485 = vpop.f32.mrf.mxu0
        %v486 = vadd.f32 %v428, %v485
        %487 = vmatmul.bf16.gmra.mxu0 %v444
        %v488 = vpop.f32.mrf.mxu0
        %v489 = vadd.f32 %v428, %v488
        %v490 = vpop.f32.mrf.mxu0
        %v491 = vadd.f32 %v428, %v490
        %492 = vmatmul.bf16.gmra.mxu0 %v447
        %v493 = vpop.f32.mrf.mxu0
        %v494 = vadd.f32 %v428, %v493
        %v495 = vpop.f32.mrf.mxu0
        %v496 = vadd.f32 %v428, %v495
        %497 = vmatmul.bf16.gmra.mxu0 %v450
        %v498 = vpop.f32.mrf.mxu0
        %v499 = vadd.f32 %v428, %v498
        %v500 = vpop.f32.mrf.mxu0
        %v501 = vadd.f32 %v428, %v500
        %502 = vmatmul.bf16.gmra.mxu0 %v453
        %v503 = vpop.f32.mrf.mxu0
        %v504 = vadd.f32 %v428, %v503
        %v505 = vpop.f32.mrf.mxu0
        %v506 = vadd.f32 %v428, %v505
        %507 = vdwg.mxu0
        %v508 = vmax.f32 %v469, 0.0
        %v509 = vmax.f32 %v471, 0.0
        %v510 = vmax.f32 %v474, 0.0
        %v511 = vmax.f32 %v476, 0.0
        %v512 = vmax.f32 %v479, 0.0
        %v513 = vmax.f32 %v481, 0.0
        %v514 = vmax.f32 %v484, 0.0
        %v515 = vmax.f32 %v486, 0.0
        %v516 = vmax.f32 %v489, 0.0
        %v517 = vmax.f32 %v491, 0.0
        %v518 = vmax.f32 %v494, 0.0
        %v519 = vmax.f32 %v496, 0.0
        %v520 = vmax.f32 %v499, 0.0
        %v521 = vmax.f32 %v501, 0.0
        %v522 = vmax.f32 %v504, 0.0
        %v523 = vmax.f32 %v506, 0.0
        %v524 = vpack.c.bf16 %v508, %v508
        %v525 = vpack.c.bf16 %v509, %v509
        %v526 = vpack.c.bf16 %v510, %v510
        %v527 = vpack.c.bf16 %v511, %v511
        %v528 = vpack.c.bf16 %v512, %v512
        %v529 = vpack.c.bf16 %v513, %v513
        %v530 = vpack.c.bf16 %v514, %v514
        %v531 = vpack.c.bf16 %v515, %v515
        %v532 = vpack.c.bf16 %v516, %v516
        %v533 = vpack.c.bf16 %v517, %v517
        %v534 = vpack.c.bf16 %v518, %v518
        %v535 = vpack.c.bf16 %v519, %v519
        %v536 = vpack.c.bf16 %v520, %v520
        %v537 = vpack.c.bf16 %v521, %v521
        %v538 = vpack.c.bf16 %v522, %v522
        %v539 = vpack.c.bf16 %v523, %v523
        %v540 = vld [vmem:[%s3] sm:$0xf]
        %v541 = vld [vmem:[%s3 + $0x4] sm:$0xf]
        %v542 = vld [vmem:[%s3 + $0x8] sm:$0xf]
        %v543 = vld [vmem:[%s3 + $0xc] sm:$0xf]
        %v544 = vld [vmem:[%s4] sm:$0x1]
        %v546 = vperm.slane %v544, 0
        %v564 = vunpack.c.l.b16 %v524
        %v565 = vunpack.c.l.b16 %v525
        %v566 = vunpack.c.l.b16 %v526
        %v567 = vunpack.c.l.b16 %v527
        %v568 = vunpack.c.l.b16 %v528
        %v569 = vunpack.c.l.b16 %v529
        %v570 = vunpack.c.l.b16 %v530
        %v571 = vunpack.c.l.b16 %v531
        %v572 = vunpack.c.l.b16 %v532
        %v573 = vunpack.c.l.b16 %v533
        %v574 = vunpack.c.l.b16 %v534
        %v575 = vunpack.c.l.b16 %v535
        %v576 = vunpack.c.l.b16 %v536
        %v577 = vunpack.c.l.b16 %v537
        %v578 = vunpack.c.l.b16 %v538
        %v579 = vunpack.c.l.b16 %v539
        %v580 = vpack.c.b16 %v565, %v564
        %v581 = vpack.c.b16 %v567, %v566
        %v582 = vpack.c.b16 %v569, %v568
        %v583 = vpack.c.b16 %v571, %v570
        %v584 = vpack.c.b16 %v573, %v572
        %v585 = vpack.c.b16 %v575, %v574
        %v586 = vpack.c.b16 %v577, %v576
        %v587 = vpack.c.b16 %v579, %v578
        %v592 = vunpack.c.l.b16 %v540
        %v593 = vunpack.c.l.b16 %v541
        %v594 = vunpack.c.l.b16 %v542
        %v595 = vunpack.c.l.b16 %v543
        %v596 = vpack.c.b16 %v593, %v592
        %v597 = vpack.c.b16 %v595, %v594
        %vm600 = vcmask 261120
        %v602 = vsel %vm600, %v580, 0
        %v605 = vsel %vm600, %v581, 0
        %v608 = vsel %vm600, %v582, 0
        %v611 = vsel %vm600, %v583, 0
        %v614 = vsel %vm600, %v584, 0
        %v617 = vsel %vm600, %v585, 0
        %v620 = vsel %vm600, %v586, 0
        %v623 = vsel %vm600, %v587, 0
        %625 = vmatpush.bf16.msra.mxu0 0
        %626 = vmatpush.bf16.msra.mxu0 0
        %627 = vmatpush.bf16.msra.mxu0 0
        %628 = vmatpush.bf16.msra.mxu0 0
        %629 = vmatpush.bf16.msra.mxu0 0
        %630 = vmatpush.bf16.msra.mxu0 0
        %631 = vmatpush.bf16.msra.mxu0 %v597
        %632 = vmatpush.bf16.msra.mxu0 %v596
        %633 = vmatmul.bf16.gmra.mxu0 %v602
        %v634 = vpop.f32.mrf.mxu0
        %v635 = vadd.f32 %v546, %v634
        %v636 = vpop.f32.mrf.mxu0
        %v637 = vadd.f32 %v546, %v636
        %638 = vmatmul.bf16.gmra.mxu0 %v605
        %v639 = vpop.f32.mrf.mxu0
        %v640 = vadd.f32 %v546, %v639
        %v641 = vpop.f32.mrf.mxu0
        %v642 = vadd.f32 %v546, %v641
        %643 = vmatmul.bf16.gmra.mxu0 %v608
        %v644 = vpop.f32.mrf.mxu0
        %v645 = vadd.f32 %v546, %v644
        %v646 = vpop.f32.mrf.mxu0
        %v647 = vadd.f32 %v546, %v646
        %648 = vmatmul.bf16.gmra.mxu0 %v611
        %v649 = vpop.f32.mrf.mxu0
        %v650 = vadd.f32 %v546, %v649
        %v651 = vpop.f32.mrf.mxu0
        %v652 = vadd.f32 %v546, %v651
        %653 = vmatmul.bf16.gmra.mxu0 %v614
        %v654 = vpop.f32.mrf.mxu0
        %v655 = vadd.f32 %v546, %v654
        %v656 = vpop.f32.mrf.mxu0
        %v657 = vadd.f32 %v546, %v656
        %658 = vmatmul.bf16.gmra.mxu0 %v617
        %v659 = vpop.f32.mrf.mxu0
        %v660 = vadd.f32 %v546, %v659
        %v661 = vpop.f32.mrf.mxu0
        %v662 = vadd.f32 %v546, %v661
        %663 = vmatmul.bf16.gmra.mxu0 %v620
        %v664 = vpop.f32.mrf.mxu0
        %v665 = vadd.f32 %v546, %v664
        %v666 = vpop.f32.mrf.mxu0
        %v667 = vadd.f32 %v546, %v666
        %668 = vmatmul.bf16.gmra.mxu0 %v623
        %v669 = vpop.f32.mrf.mxu0
        %v670 = vadd.f32 %v546, %v669
        %v671 = vpop.f32.mrf.mxu0
        %v672 = vadd.f32 %v546, %v671
        %673 = vdwg.mxu0
        %v674 = vmax.f32 %v635, 0.0
        %v675 = vmax.f32 %v637, 0.0
        %v676 = vmax.f32 %v640, 0.0
        %v677 = vmax.f32 %v642, 0.0
        %v678 = vmax.f32 %v645, 0.0
        %v679 = vmax.f32 %v647, 0.0
        %v680 = vmax.f32 %v650, 0.0
        %v681 = vmax.f32 %v652, 0.0
        %v682 = vmax.f32 %v655, 0.0
        %v683 = vmax.f32 %v657, 0.0
        %v684 = vmax.f32 %v660, 0.0
        %v685 = vmax.f32 %v662, 0.0
        %v686 = vmax.f32 %v665, 0.0
        %v687 = vmax.f32 %v667, 0.0
        %v688 = vmax.f32 %v670, 0.0
        %v689 = vmax.f32 %v672, 0.0
        %v690 = vpack.c.bf16 %v675, %v674
        %v691 = vpack.c.bf16 %v677, %v676
        %v692 = vpack.c.bf16 %v679, %v678
        %v693 = vpack.c.bf16 %v681, %v680
        %v694 = vpack.c.bf16 %v683, %v682
        %v695 = vpack.c.bf16 %v685, %v684
        %v696 = vpack.c.bf16 %v687, %v686
        %v697 = vpack.c.bf16 %v689, %v688
        %v698 = vld [vmem:[%s5] sm:$0xf]
        %v699 = vld [vmem:[%s5 + $0x4] sm:$0xf]
        %v700 = vld [vmem:[%s5 + $0x8] sm:$0xf]
        %v701 = vld [vmem:[%s5 + $0xc] sm:$0xf]
        %v702 = vld [vmem:[%s5 + $0x10] sm:$0xf]
        %v703 = vld [vmem:[%s5 + $0x14] sm:$0xf]
        %v704 = vld [vmem:[%s5 + $0x18] sm:$0xf]
        %v705 = vld [vmem:[%s5 + $0x1c] sm:$0xf]
        %v706 = vld [vmem:[%s6] sm:$0x1]
        %v708 = vperm.slane %v706, 0
        %v718 = vunpack.c.l.b16 %v698
        %v719 = vunpack.c.l.b16 %v699
        %v720 = vunpack.c.l.b16 %v700
        %v721 = vunpack.c.l.b16 %v701
        %v722 = vunpack.c.l.b16 %v702
        %v723 = vunpack.c.l.b16 %v703
        %v724 = vunpack.c.l.b16 %v704
        %v725 = vunpack.c.l.b16 %v705
        %v726 = vpack.c.b16 %v719, %v718
        %v727 = vpack.c.b16 %v721, %v720
        %v728 = vpack.c.b16 %v723, %v722
        %v729 = vpack.c.b16 %v725, %v724
        %vm734 = vcmask 523264
        %v736 = vsel %vm734, %v690, 0
        %v739 = vsel %vm734, %v691, 0
        %v742 = vsel %vm734, %v692, 0
        %v745 = vsel %vm734, %v693, 0
        %v748 = vsel %vm734, %v694, 0
        %v751 = vsel %vm734, %v695, 0
        %v754 = vsel %vm734, %v696, 0
        %v757 = vsel %vm734, %v697, 0
        %759 = vmatpush.bf16.msra.mxu0 0
        %760 = vmatpush.bf16.msra.mxu0 0
        %761 = vmatpush.bf16.msra.mxu0 0
        %762 = vmatpush.bf16.msra.mxu0 0
        %763 = vmatpush.bf16.msra.mxu0 %v729
        %764 = vmatpush.bf16.msra.mxu0 %v728
        %765 = vmatpush.bf16.msra.mxu0 %v727
        %766 = vmatpush.bf16.msra.mxu0 %v726
        %767 = vmatmul.bf16.gmra.mxu0 %v736
        %v768 = vpop.f32.mrf.mxu0
        %v769 = vadd.f32 %v708, %v768
        %v770 = vpop.f32.mrf.mxu0
        %v771 = vadd.f32 %v708, %v770
        %772 = vmatmul.bf16.gmra.mxu0 %v739
        %v773 = vpop.f32.mrf.mxu0
        %v774 = vadd.f32 %v708, %v773
        %v775 = vpop.f32.mrf.mxu0
        %v776 = vadd.f32 %v708, %v775
        %777 = vmatmul.bf16.gmra.mxu0 %v742
        %v778 = vpop.f32.mrf.mxu0
        %v779 = vadd.f32 %v708, %v778
        %v780 = vpop.f32.mrf.mxu0
        %v781 = vadd.f32 %v708, %v780
        %782 = vmatmul.bf16.gmra.mxu0 %v745
        %v783 = vpop.f32.mrf.mxu0
        %v784 = vadd.f32 %v708, %v783
        %v785 = vpop.f32.mrf.mxu0
        %v786 = vadd.f32 %v708, %v785
        %787 = vmatmul.bf16.gmra.mxu0 %v748
        %v788 = vpop.f32.mrf.mxu0
        %v789 = vadd.f32 %v708, %v788
        %v790 = vpop.f32.mrf.mxu0
        %v791 = vadd.f32 %v708, %v790
        %792 = vmatmul.bf16.gmra.mxu0 %v751
        %v793 = vpop.f32.mrf.mxu0
        %v794 = vadd.f32 %v708, %v793
        %v795 = vpop.f32.mrf.mxu0
        %v796 = vadd.f32 %v708, %v795
        %797 = vmatmul.bf16.gmra.mxu0 %v754
        %v798 = vpop.f32.mrf.mxu0
        %v799 = vadd.f32 %v708, %v798
        %v800 = vpop.f32.mrf.mxu0
        %v801 = vadd.f32 %v708, %v800
        %802 = vmatmul.bf16.gmra.mxu0 %v757
        %v803 = vpop.f32.mrf.mxu0
        %v804 = vadd.f32 %v708, %v803
        %v805 = vpop.f32.mrf.mxu0
        %v806 = vadd.f32 %v708, %v805
        %807 = vdwg.mxu0
        %vm808 = vcmask 257024
        %809 = vst.msk [vmem:[%s386] sm:$0xf] %vm808, %v524
        %810 = vst.msk [vmem:[%s386 + $0x4] sm:$0xf] %vm808, %v525
        %811 = vst.msk [vmem:[%s386 + $0x8] sm:$0xf] %vm808, %v526
        %812 = vst.msk [vmem:[%s386 + $0xc] sm:$0xf] %vm808, %v527
        %813 = vst.msk [vmem:[%s386 + $0x10] sm:$0xf] %vm808, %v528
        %814 = vst.msk [vmem:[%s386 + $0x14] sm:$0xf] %vm808, %v529
        %815 = vst.msk [vmem:[%s386 + $0x18] sm:$0xf] %vm808, %v530
        %816 = vst.msk [vmem:[%s386 + $0x1c] sm:$0xf] %vm808, %v531
        %817 = vst.msk [vmem:[%s386 + $0x20] sm:$0xf] %vm808, %v532
        %818 = vst.msk [vmem:[%s386 + $0x24] sm:$0xf] %vm808, %v533
        %819 = vst.msk [vmem:[%s386 + $0x28] sm:$0xf] %vm808, %v534
        %820 = vst.msk [vmem:[%s386 + $0x2c] sm:$0xf] %vm808, %v535
        %821 = vst.msk [vmem:[%s386 + $0x30] sm:$0xf] %vm808, %v536
        %822 = vst.msk [vmem:[%s386 + $0x34] sm:$0xf] %vm808, %v537
        %823 = vst.msk [vmem:[%s386 + $0x38] sm:$0xf] %vm808, %v538
        %824 = vst.msk [vmem:[%s386 + $0x3c] sm:$0xf] %vm808, %v539
        %v825 = vpack.c.bf16 %v769, %v769
        %v826 = vpack.c.bf16 %v771, %v771
        %v827 = vpack.c.bf16 %v774, %v774
        %v828 = vpack.c.bf16 %v776, %v776
        %v829 = vpack.c.bf16 %v779, %v779
        %v830 = vpack.c.bf16 %v781, %v781
        %v831 = vpack.c.bf16 %v784, %v784
        %v832 = vpack.c.bf16 %v786, %v786
        %v833 = vpack.c.bf16 %v789, %v789
        %v834 = vpack.c.bf16 %v791, %v791
        %v835 = vpack.c.bf16 %v794, %v794
        %v836 = vpack.c.bf16 %v796, %v796
        %v837 = vpack.c.bf16 %v799, %v799
        %v838 = vpack.c.bf16 %v801, %v801
        %v839 = vpack.c.bf16 %v804, %v804
        %v840 = vpack.c.bf16 %v806, %v806
        %841 = vst.msk [vmem:[%s392] sm:$0xf] %vm808, %v825
        %842 = vst.msk [vmem:[%s392 + $0x4] sm:$0xf] %vm808, %v826
        %843 = vst.msk [vmem:[%s392 + $0x8] sm:$0xf] %vm808, %v827
        %844 = vst.msk [vmem:[%s392 + $0xc] sm:$0xf] %vm808, %v828
        %845 = vst.msk [vmem:[%s392 + $0x10] sm:$0xf] %vm808, %v829
        %846 = vst.msk [vmem:[%s392 + $0x14] sm:$0xf] %vm808, %v830
        %847 = vst.msk [vmem:[%s392 + $0x18] sm:$0xf] %vm808, %v831
        %848 = vst.msk [vmem:[%s392 + $0x1c] sm:$0xf] %vm808, %v832
        %849 = vst.msk [vmem:[%s392 + $0x20] sm:$0xf] %vm808, %v833
        %850 = vst.msk [vmem:[%s392 + $0x24] sm:$0xf] %vm808, %v834
        %851 = vst.msk [vmem:[%s392 + $0x28] sm:$0xf] %vm808, %v835
        %852 = vst.msk [vmem:[%s392 + $0x2c] sm:$0xf] %vm808, %v836
        %853 = vst.msk [vmem:[%s392 + $0x30] sm:$0xf] %vm808, %v837
        %854 = vst.msk [vmem:[%s392 + $0x34] sm:$0xf] %vm808, %v838
        %855 = vst.msk [vmem:[%s392 + $0x38] sm:$0xf] %vm808, %v839
        %856 = vst.msk [vmem:[%s392 + $0x3c] sm:$0xf] %vm808, %v840
        %873 = vrot.lane.b32.xlu0 %v825, 96
        %v874 = vpop.permute.xlu0 %873
        %875 = vrot.lane.b32.xlu0 %v826, 96
        %v876 = vpop.permute.xlu0 %875
        %877 = vrot.lane.b32.xlu0 %v827, 96
        %v878 = vpop.permute.xlu0 %877
        %879 = vrot.lane.b32.xlu0 %v828, 96
        %v880 = vpop.permute.xlu0 %879
        %881 = vrot.lane.b32.xlu0 %v829, 96
        %v882 = vpop.permute.xlu0 %881
        %883 = vrot.lane.b32.xlu0 %v830, 96
        %v884 = vpop.permute.xlu0 %883
        %885 = vrot.lane.b32.xlu0 %v831, 96
        %v886 = vpop.permute.xlu0 %885
        %887 = vrot.lane.b32.xlu0 %v832, 96
        %v888 = vpop.permute.xlu0 %887
        %889 = vrot.lane.b32.xlu0 %v833, 96
        %v890 = vpop.permute.xlu0 %889
        %891 = vrot.lane.b32.xlu0 %v834, 96
        %v892 = vpop.permute.xlu0 %891
        %893 = vrot.lane.b32.xlu0 %v835, 96
        %v894 = vpop.permute.xlu0 %893
        %895 = vrot.lane.b32.xlu0 %v836, 96
        %v896 = vpop.permute.xlu0 %895
        %897 = vrot.lane.b32.xlu0 %v837, 96
        %v898 = vpop.permute.xlu0 %897
        %899 = vrot.lane.b32.xlu0 %v838, 96
        %v900 = vpop.permute.xlu0 %899
        %901 = vrot.lane.b32.xlu0 %v839, 96
        %v902 = vpop.permute.xlu0 %901
        %903 = vrot.lane.b32.xlu0 %v840, 96
        %v904 = vpop.permute.xlu0 %903
        %921 = vst.msk [vmem:[%s398] sm:$0xf] %vm808, %v874
        %922 = vst.msk [vmem:[%s398 + $0x4] sm:$0xf] %vm808, %v876
        %923 = vst.msk [vmem:[%s398 + $0x8] sm:$0xf] %vm808, %v878
        %924 = vst.msk [vmem:[%s398 + $0xc] sm:$0xf] %vm808, %v880
        %925 = vst.msk [vmem:[%s398 + $0x10] sm:$0xf] %vm808, %v882
        %926 = vst.msk [vmem:[%s398 + $0x14] sm:$0xf] %vm808, %v884
        %927 = vst.msk [vmem:[%s398 + $0x18] sm:$0xf] %vm808, %v886
        %928 = vst.msk [vmem:[%s398 + $0x1c] sm:$0xf] %vm808, %v888
        %929 = vst.msk [vmem:[%s398 + $0x20] sm:$0xf] %vm808, %v890
        %930 = vst.msk [vmem:[%s398 + $0x24] sm:$0xf] %vm808, %v892
        %931 = vst.msk [vmem:[%s398 + $0x28] sm:$0xf] %vm808, %v894
        %932 = vst.msk [vmem:[%s398 + $0x2c] sm:$0xf] %vm808, %v896
        %933 = vst.msk [vmem:[%s398 + $0x30] sm:$0xf] %vm808, %v898
        %934 = vst.msk [vmem:[%s398 + $0x34] sm:$0xf] %vm808, %v900
        %935 = vst.msk [vmem:[%s398 + $0x38] sm:$0xf] %vm808, %v902
        %936 = vst.msk [vmem:[%s398 + $0x3c] sm:$0xf] %vm808, %v904
        %v937 = vlaneseq
        %v938 = vshrl.u32 %v937, 7
        %v939 = vadd.s32 %v938, 8
        %v940 = vadd.s32 %v938, 16
        %v941 = vadd.s32 %v938, 24
        %v942 = vadd.s32 %v938, 32
        %v943 = vadd.s32 %v938, 40
        %v944 = vadd.s32 %v938, 48
        %v945 = vadd.s32 %v938, 56
        %v946 = vadd.s32 %v938, 64
        %v947 = vadd.s32 %v938, 72
        %v948 = vadd.s32 %v938, 80
        %v949 = vadd.s32 %v938, 88
        %v950 = vadd.s32 %v938, 96
        %v951 = vadd.s32 %v938, 104
        %v952 = vadd.s32 %v938, 112
        %v953 = vadd.s32 %v938, 120
        %s954 = smul.u32 %s25, 128
        %v955 = vstv %s954
        %v956 = vadd.s32 %v938, %v955
        %v957 = vadd.s32 %v939, %v955
        %v958 = vadd.s32 %v940, %v955
        %v959 = vadd.s32 %v941, %v955
        %v960 = vadd.s32 %v942, %v955
        %v961 = vadd.s32 %v943, %v955
        %v962 = vadd.s32 %v944, %v955
        %v963 = vadd.s32 %v945, %v955
        %v964 = vadd.s32 %v946, %v955
        %v965 = vadd.s32 %v947, %v955
        %v966 = vadd.s32 %v948, %v955
        %v967 = vadd.s32 %v949, %v955
        %v968 = vadd.s32 %v950, %v955
        %v969 = vadd.s32 %v951, %v955
        %v970 = vadd.s32 %v952, %v955
        %v971 = vadd.s32 %v953, %v955
        %vm972 = vcmp.lt.s32.totalorder %v956, 256
        %vm973 = vcmp.lt.s32.totalorder %v957, 256
        %vm974 = vcmp.lt.s32.totalorder %v958, 256
        %vm975 = vcmp.lt.s32.totalorder %v959, 256
        %vm976 = vcmp.lt.s32.totalorder %v960, 256
        %vm977 = vcmp.lt.s32.totalorder %v961, 256
        %vm978 = vcmp.lt.s32.totalorder %v962, 256
        %vm979 = vcmp.lt.s32.totalorder %v963, 256
        %vm980 = vcmp.lt.s32.totalorder %v964, 256
        %vm981 = vcmp.lt.s32.totalorder %v965, 256
        %vm982 = vcmp.lt.s32.totalorder %v966, 256
        %vm983 = vcmp.lt.s32.totalorder %v967, 256
        %vm984 = vcmp.lt.s32.totalorder %v968, 256
        %vm985 = vcmp.lt.s32.totalorder %v969, 256
        %vm986 = vcmp.lt.s32.totalorder %v970, 256
        %vm987 = vcmp.lt.s32.totalorder %v971, 256
        %v988 = vsel %vm972, %v769, 0.0
        %v989 = vsel %vm973, %v771, 0.0
        %v990 = vsel %vm974, %v774, 0.0
        %v991 = vsel %vm975, %v776, 0.0
        %v992 = vsel %vm976, %v779, 0.0
        %v993 = vsel %vm977, %v781, 0.0
        %v994 = vsel %vm978, %v784, 0.0
        %v995 = vsel %vm979, %v786, 0.0
        %v996 = vsel %vm980, %v789, 0.0
        %v997 = vsel %vm981, %v791, 0.0
        %v998 = vsel %vm982, %v794, 0.0
        %v999 = vsel %vm983, %v796, 0.0
        %v1000 = vsel %vm984, %v799, 0.0
        %v1001 = vsel %vm985, %v801, 0.0
        %v1002 = vsel %vm986, %v804, 0.0
        %v1003 = vsel %vm987, %v806, 0.0
        %v1004 = vsel %vm600, %v988, 0.0
        %v1005 = vsel %vm600, %v989, 0.0
        %v1006 = vadd.f32 %v1004, %v1005
        %v1007 = vsel %vm600, %v990, 0.0
        %v1008 = vadd.f32 %v1006, %v1007
        %v1009 = vsel %vm600, %v991, 0.0
        %v1010 = vadd.f32 %v1008, %v1009
        %v1011 = vsel %vm600, %v992, 0.0
        %v1012 = vadd.f32 %v1010, %v1011
        %v1013 = vsel %vm600, %v993, 0.0
        %v1014 = vadd.f32 %v1012, %v1013
        %v1015 = vsel %vm600, %v994, 0.0
        %v1016 = vadd.f32 %v1014, %v1015
        %v1017 = vsel %vm600, %v995, 0.0
        %v1018 = vadd.f32 %v1016, %v1017
        %v1019 = vsel %vm600, %v996, 0.0
        %v1020 = vadd.f32 %v1018, %v1019
        %v1021 = vsel %vm600, %v997, 0.0
        %v1022 = vadd.f32 %v1020, %v1021
        %v1023 = vsel %vm600, %v998, 0.0
        %v1024 = vadd.f32 %v1022, %v1023
        %v1025 = vsel %vm600, %v999, 0.0
        %v1026 = vadd.f32 %v1024, %v1025
        %v1027 = vsel %vm600, %v1000, 0.0
        %v1028 = vadd.f32 %v1026, %v1027
        %v1029 = vsel %vm600, %v1001, 0.0
        %v1030 = vadd.f32 %v1028, %v1029
        %v1031 = vsel %vm600, %v1002, 0.0
        %v1032 = vadd.f32 %v1030, %v1031
        %v1033 = vsel %vm600, %v1003, 0.0
        %v1034 = vadd.f32 %v1032, %v1033
        %v1035 = vrot.slane %v1034, 4
        %v1036 = vadd.f32 %v1034, %v1035
        %v1037 = vrot.slane %v1036, 2
        %v1038 = vadd.f32 %v1036, %v1037
        %v1039 = vrot.slane %v1038, 1
        %v1040 = vadd.f32 %v1038, %v1039
        %vm1041 = vcmask 253952
        %1042 = vst.msk [vmem:[%s375] sm:$0x1] %vm1041, %v1040
        %v1043 = vmul.f32 %v988, %v988
        %v1044 = vmul.f32 %v989, %v989
        %v1045 = vmul.f32 %v990, %v990
        %v1046 = vmul.f32 %v991, %v991
        %v1047 = vmul.f32 %v992, %v992
        %v1048 = vmul.f32 %v993, %v993
        %v1049 = vmul.f32 %v994, %v994
        %v1050 = vmul.f32 %v995, %v995
        %v1051 = vmul.f32 %v996, %v996
        %v1052 = vmul.f32 %v997, %v997
        %v1053 = vmul.f32 %v998, %v998
        %v1054 = vmul.f32 %v999, %v999
        %v1055 = vmul.f32 %v1000, %v1000
        %v1056 = vmul.f32 %v1001, %v1001
        %v1057 = vmul.f32 %v1002, %v1002
        %v1058 = vmul.f32 %v1003, %v1003
        %v1059 = vsel %vm600, %v1043, 0.0
        %v1060 = vsel %vm600, %v1044, 0.0
        %v1061 = vadd.f32 %v1059, %v1060
        %v1062 = vsel %vm600, %v1045, 0.0
        %v1063 = vadd.f32 %v1061, %v1062
        %v1064 = vsel %vm600, %v1046, 0.0
        %v1065 = vadd.f32 %v1063, %v1064
        %v1066 = vsel %vm600, %v1047, 0.0
        %v1067 = vadd.f32 %v1065, %v1066
        %v1068 = vsel %vm600, %v1048, 0.0
        %v1069 = vadd.f32 %v1067, %v1068
        %v1070 = vsel %vm600, %v1049, 0.0
        %v1071 = vadd.f32 %v1069, %v1070
        %v1072 = vsel %vm600, %v1050, 0.0
        %v1073 = vadd.f32 %v1071, %v1072
        %v1074 = vsel %vm600, %v1051, 0.0
        %v1075 = vadd.f32 %v1073, %v1074
        %v1076 = vsel %vm600, %v1052, 0.0
        %v1077 = vadd.f32 %v1075, %v1076
        %v1078 = vsel %vm600, %v1053, 0.0
        %v1079 = vadd.f32 %v1077, %v1078
        %v1080 = vsel %vm600, %v1054, 0.0
        %v1081 = vadd.f32 %v1079, %v1080
        %v1082 = vsel %vm600, %v1055, 0.0
        %v1083 = vadd.f32 %v1081, %v1082
        %v1084 = vsel %vm600, %v1056, 0.0
        %v1085 = vadd.f32 %v1083, %v1084
        %v1086 = vsel %vm600, %v1057, 0.0
        %v1087 = vadd.f32 %v1085, %v1086
        %v1088 = vsel %vm600, %v1058, 0.0
        %v1089 = vadd.f32 %v1087, %v1088
        %v1090 = vrot.slane %v1089, 4
        %v1091 = vadd.f32 %v1089, %v1090
        %v1092 = vrot.slane %v1091, 2
        %v1093 = vadd.f32 %v1091, %v1092
        %v1094 = vrot.slane %v1093, 1
        %v1095 = vadd.f32 %v1093, %v1094
        %1096 = vst.msk [vmem:[%s375 + $0x1] sm:$0x1] %vm1041, %v1095
        %s1097 = smul.u32 16, %s25
        %p1098 = scmp.lt.s32.totalorder %s1097, 31
        %s1099 = scalar_select %p1098, %s1097, 31
        %s1100 = smul.addr %s1099, 4
        %s1101 = scalar_lea.vmem %s7, %s1100
        %s1102 = smul.u32 16, %s25
        %p1103 = scmp.lt.s32.totalorder %s1102, 31
        %s1104 = scalar_select %p1103, %s1102, 31
        %s1105 = smul.addr %s1104, 4
        %s1106 = scalar_lea.vmem %s8, %s1105
        %s1107 = smul.u32 16, %s25
        %p1108 = scmp.lt.s32.totalorder %s1107, 31
        %s1109 = scalar_select %p1108, %s1107, 31
        %s1110 = smul.addr %s1109, 4
        %s1111 = scalar_lea.vmem %s9, %s1110
        %s1112 = sand.u32 %s263, 1
        %s1113 = scalar_lea.sflag [#allocation3], %s1112
        %s1114 = sand.u32 %s263, 1
        %s1115 = smul.addr %s1114, 2
        %s1116 = scalar_lea.vmem [#allocation2], %s1115
        // Predicated region
        $region49: #{tpu_custom_call.1} parent=47 // pred_check
          %p1117 = pneg %p195
        $region50: #{tpu_custom_call.1} parent=47 // pred_check_branch
          %1119 = sbr.rel (%p1117) target = $region52
        $region51: #{tpu_custom_call.1} parent=47 // pred_region
          %s1120 = smul.u32 16, %s25
        $region52: #{tpu_custom_call.1} parent=47 // pred_fallthru
          _
        // Predicated region
        $region53: #{tpu_custom_call.1} parent=47 // pred_check
          %p1121 = pneg %p221
        $region54: #{tpu_custom_call.1} parent=47 // pred_check_branch
          %1123 = sbr.rel (%p1121) target = $region56
        $region55: #{tpu_custom_call.1} parent=47 // pred_region
          %s1124 = smul.u32 16, %s25
        $region56: #{tpu_custom_call.1} parent=47 // pred_fallthru
          _
        // Predicated region
        $region57: #{tpu_custom_call.1} parent=47 // pred_check
          %p1125 = pneg %p247
        $region58: #{tpu_custom_call.1} parent=47 // pred_check_branch
          %1127 = sbr.rel (%p1125) target = $region60
        $region59: #{tpu_custom_call.1} parent=47 // pred_region
          %s1128 = smul.u32 16, %s25
        $region60: #{tpu_custom_call.1} parent=47 // pred_fallthru
          _
        // Predicated region
        $region61: #{tpu_custom_call.1} parent=47 // pred_check
          %p1129 = pneg %p273
        $region62: #{tpu_custom_call.1} parent=47 // pred_check_branch
          %1131 = sbr.rel (%p1129) target = $region64
        $region63: #{tpu_custom_call.1} parent=47 // pred_region
          %1133 = vsyncadd %s1113, 0
          %s1134 = smul.addr %s25, 2
          %s1135 = scalar_lea.hbm %s10, %s1134
          %s1137 = sshll.u32 %s1116, 4
          %s1138 = int_to_ptr.vmem [resolvable:$true] %s1137
          %s1139 = sshll.u32 %s1135, 4
          %s1140 = int_to_ptr.hbm [resolvable:$true] %s1139
          %1142 = dma.vmem_to_hbm [thread:$0]  %s1138, 32, %s1140, %s1113
        $region64: #{tpu_custom_call.1} parent=47 // pred_fallthru
          _
      $region48: #{tpu_custom_call.1} parent=5 // pred_fallthru
        _
      %p1143 = scmp.le.s32.totalorder 2, %s20
      // Predicated region
      $region65: #{tpu_custom_call.1} parent=5 // pred_check
        %p1144 = pneg %p1143
      $region66: #{tpu_custom_call.1} parent=5 // pred_check_branch
        %1146 = sbr.rel (%p1144) target = $region68
      $region67: #{tpu_custom_call.1} parent=5 // pred_region
        %s1147 = ssub.s32 %s20, 2
        // Predicated region
        $region69: #{tpu_custom_call.1} parent=67 // pred_check
          %p1148 = pneg %p201
        $region70: #{tpu_custom_call.1} parent=67 // pred_check_branch
          %1150 = sbr.rel (%p1148) target = $region72
        $region71: #{tpu_custom_call.1} parent=67 // pred_region
          %s1151 = smul.u32 16, %s26
          %p1152 = scmp.lt.s32.totalorder %s1151, 31
          %s1153 = scalar_select %p1152, %s1151, 31
          %s1154 = smul.addr %s1153, 4
          %s1155 = scalar_lea.vmem %s7, %s1154
        $region72: #{tpu_custom_call.1} parent=67 // pred_fallthru
          _
        // Predicated region
        $region73: #{tpu_custom_call.1} parent=67 // pred_check
          %p1156 = pneg %p227
        $region74: #{tpu_custom_call.1} parent=67 // pred_check_branch
          %1158 = sbr.rel (%p1156) target = $region76
        $region75: #{tpu_custom_call.1} parent=67 // pred_region
          %s1159 = smul.u32 16, %s26
          %p1160 = scmp.lt.s32.totalorder %s1159, 31
          %s1161 = scalar_select %p1160, %s1159, 31
          %s1162 = smul.addr %s1161, 4
          %s1163 = scalar_lea.vmem %s8, %s1162
        $region76: #{tpu_custom_call.1} parent=67 // pred_fallthru
          _
        // Predicated region
        $region77: #{tpu_custom_call.1} parent=67 // pred_check
          %p1164 = pneg %p253
        $region78: #{tpu_custom_call.1} parent=67 // pred_check_branch
          %1166 = sbr.rel (%p1164) target = $region80
        $region79: #{tpu_custom_call.1} parent=67 // pred_region
          %s1167 = smul.u32 16, %s26
          %p1168 = scmp.lt.s32.totalorder %s1167, 31
          %s1169 = scalar_select %p1168, %s1167, 31
          %s1170 = smul.addr %s1169, 4
          %s1171 = scalar_lea.vmem %s9, %s1170
        $region80: #{tpu_custom_call.1} parent=67 // pred_fallthru
          _
        // Predicated region
        $region81: #{tpu_custom_call.1} parent=67 // pred_check
          %p1172 = pneg %p279
        $region82: #{tpu_custom_call.1} parent=67 // pred_check_branch
          %1174 = sbr.rel (%p1172) target = $region84
        $region83: #{tpu_custom_call.1} parent=67 // pred_region
          %s1175 = sand.u32 %s264, 1
          %s1176 = scalar_lea.sflag [#allocation3], %s1175
          %s1177 = sand.u32 %s264, 1
          %s1178 = smul.addr %s1177, 2
          %s1179 = scalar_lea.vmem [#allocation2], %s1178
          %1181 = dma.done %s1176, 32
        $region84: #{tpu_custom_call.1} parent=67 // pred_fallthru
          _
      $region68: #{tpu_custom_call.1} parent=5 // pred_fallthru
        _
    $region6: #{tpu_custom_call.1} parent=1 // loop_footer
      %s24 = sadd.s32 1, %s20
    $region7: #{tpu_custom_call.1} parent=1 // loop_footer_branch
      %19 = sbr.rel target = $region3
    $region8: #{tpu_custom_call.1} parent=1 // loop_exit
      _
    %1182 = vsyncpa [#allocation3], 1
    %s1183 = scalar_lea.sflag [#allocation3], 1
    %1184 = vsyncpa %s1183, 1

</llo_original>
